<compile_context>
chip_gen: v5e
topology: v5e:2x2
jax: 0.10.0
libtpu: 0.0.40
codegen_flags: <defaults>
</compile_context>

<pallas_src>
import jax
import jax.numpy as jnp
from jax import lax
from jax.experimental import pallas as pl
from jax.experimental.pallas import tpu as pltpu


def _bilstm_cls_kernel(x_ref,       # (T, Bp, D)
                       wih_ref,     # (D, 8H)   [fwd 4H | bwd 4H], gates i,f,g,o
                       b_ref,       # (1, 8H)   combined b_ih + b_hh, both dirs
                       whh_f_ref,   # (H, 4H)
                       whh_b_ref,   # (H, 4H)
                       wcf_ref,     # (H, Cp)   classifier weight, fwd half
                       wcb_ref,     # (H, Cp)   classifier weight, bwd half
                       bc_ref,      # (1, Cp)
                       out_ref,     # (T, Bp, Cp)
                       xp_ref,      # (T, Bp, 8H) scratch: hoisted input proj
                       hf_ref,      # (T, Bp, H)  scratch: fwd hidden states
                       hb_ref):     # (T, Bp, H)  scratch: bwd hidden states
    T, B, D = x_ref.shape
    H = whh_f_ref.shape[0]
    G = 4 * H

    # ---- Hoisted input projection for BOTH directions (one lane-dense matmul),
    # biases folded in, so the serialized recurrence only does h @ Whh.
    x_flat = x_ref[...].reshape(T * B, D)
    xp = jnp.dot(x_flat, wih_ref[...],
                 preferred_element_type=jnp.float32) + b_ref[...]        # (T*B, 8H)
    xp_ref[...] = xp.reshape(T, B, 2 * G)

    whh_f = whh_f_ref[...]
    whh_b = whh_b_ref[...]

    def lstm_step(xg, h, c, whh):
        # xg already contains x_t @ Wih + b_ih + b_hh.
        gates = xg + jnp.dot(h, whh, preferred_element_type=jnp.float32)  # (B, 4H)
        sig = jax.nn.sigmoid(gates)   # one EUP push over the full lane-dense tile
        th = jnp.tanh(gates)          # one EUP push
        i_g = sig[:, 0 * H:1 * H]
        f_g = sig[:, 1 * H:2 * H]
        g_g = th[:, 2 * H:3 * H]
        o_g = sig[:, 3 * H:4 * H]
        c_new = f_g * c + i_g * g_g
        h_new = o_g * jnp.tanh(c_new)
        return h_new, c_new

    # ---- Fused, fully-unrolled bidirectional recurrence.
    def body(step, carry):
        hf, cf, hb, cb = carry
        tb = T - 1 - step
        xp_f = xp_ref[step]                                   # (B, 8H)
        xp_b = xp_ref[tb]
        hf, cf = lstm_step(xp_f[:, :G], hf, cf, whh_f)
        hf_ref[step] = hf
        hb, cb = lstm_step(xp_b[:, G:], hb, cb, whh_b)
        hb_ref[tb] = hb
        return hf, cf, hb, cb

    z = jnp.zeros((B, H), jnp.float32)
    lax.fori_loop(0, T, body, (z, z, z, z), unroll=True)

    # ---- Classifier: per-direction weights -> no concat / extra VMEM copy.
    hf_flat = hf_ref[...].reshape(T * B, H)
    hb_flat = hb_ref[...].reshape(T * B, H)
    logits = (jnp.dot(hf_flat, wcf_ref[...], preferred_element_type=jnp.float32)
              + jnp.dot(hb_flat, wcb_ref[...], preferred_element_type=jnp.float32)
              + bc_ref[...])                                   # (T*B, Cp)
    out_ref[...] = logits.reshape(T, B, -1)                    # lane-dense store


def _round_up(x, m):
    return (x + m - 1) // m * m


def bilstm_classifier(x_tbd, params):
    """x_tbd: (T, B, D) float32. Returns (T, B, C) float32."""
    T, B, D = x_tbd.shape
    H = params["whh_f"].shape[0]
    C = params["wc"].shape[1]

    Bp = _round_up(max(B, 8), 8)        # fill f32 sublanes
    Cp = _round_up(max(C, 128), 128)    # lane-dense classifier output

    if Bp != B:
        x_tbd = jnp.pad(x_tbd, ((0, 0), (0, Bp - B), (0, 0)))

    # Fused input-projection weights / biases for both directions.
    wih = jnp.concatenate([params["wih_f"], params["wih_b"]], axis=-1)   # (D, 8H)
    b = jnp.concatenate([params["b_f"], params["b_b"]], axis=-1)         # (1, 8H)

    # Classifier weight split per direction and padded to a lane-dense width.
    wc = params["wc"]
    wcf = jnp.pad(wc[:H], ((0, 0), (0, Cp - C)))                         # (H, Cp)
    wcb = jnp.pad(wc[H:], ((0, 0), (0, Cp - C)))                         # (H, Cp)
    bc = jnp.pad(params["bc"], ((0, 0), (0, Cp - C)))                    # (1, Cp)

    out = pl.pallas_call(
        _bilstm_cls_kernel,
        out_shape=jax.ShapeDtypeStruct((T, Bp, Cp), jnp.float32),
        in_specs=[pl.BlockSpec(memory_space=pltpu.MemorySpace.VMEM)] * 8,
        out_specs=pl.BlockSpec(memory_space=pltpu.MemorySpace.VMEM),
        scratch_shapes=[pltpu.VMEM((T, Bp, 8 * H), jnp.float32),   # hoisted x-proj
                        pltpu.VMEM((T, Bp, H), jnp.float32),       # fwd hidden
                        pltpu.VMEM((T, Bp, H), jnp.float32)],      # bwd hidden
    )(x_tbd, wih, b, params["whh_f"], params["whh_b"], wcf, wcb, bc)

    return out[:, :B, :C]     # strip batch / class padding


@jax.jit
def ner_forward(x_ids, p_ids, params):
    """Full NERModel forward (eval mode).

    x_ids, p_ids: (B, T) int32 token / POS-tag ids.
    Returns logits (B, T, num_classes) float32.
    """
    word_emb = params["word_emb"][x_ids]         # (B, T, E)
    pos_emb = params["pos_emb"][p_ids]           # (B, T, P)
    # dropout == identity (eval)
    concat = jnp.concatenate([word_emb, pos_emb], axis=-1).astype(jnp.float32)
    x_tbd = jnp.transpose(concat, (1, 0, 2))     # time-major (T, B, D)
    out_tbc = bilstm_classifier(x_tbd, params)   # (T, B, C)
    return jnp.transpose(out_tbc, (1, 0, 2))     # (B, T, C)


# ------------------------- pure-JAX reference -------------------------------
def _ref_lstm_dir(x_tbd, wih, whh, b, reverse):
    T, B, _ = x_tbd.shape
    H = whh.shape[0]
    h = jnp.zeros((B, H), jnp.float32)
    c = jnp.zeros((B, H), jnp.float32)
    out = jnp.zeros((T, B, H), jnp.float32)
    ts = range(T - 1, -1, -1) if reverse else range(T)
    for t in ts:
        gates = x_tbd[t] @ wih + h @ whh + b
        i_g = jax.nn.sigmoid(gates[:, 0 * H:1 * H])
        f_g = jax.nn.sigmoid(gates[:, 1 * H:2 * H])
        g_g = jnp.tanh(gates[:, 2 * H:3 * H])
        o_g = jax.nn.sigmoid(gates[:, 3 * H:4 * H])
        c = f_g * c + i_g * g_g
        h = o_g * jnp.tanh(c)
        out = out.at[t].set(h)
    return out


def ner_forward_ref(x_ids, p_ids, params):
    word_emb = params["word_emb"][x_ids]
    pos_emb = params["pos_emb"][p_ids]
    concat = jnp.concatenate([word_emb, pos_emb], axis=-1).astype(jnp.float32)
    x_tbd = jnp.transpose(concat, (1, 0, 2))
    hf = _ref_lstm_dir(x_tbd, params["wih_f"], params["whh_f"], params["b_f"], False)
    hb = _ref_lstm_dir(x_tbd, params["wih_b"], params["whh_b"], params["b_b"], True)
    o = jnp.concatenate([hf, hb], axis=-1)
    logits = o @ params["wc"] + params["bc"][0]
    return jnp.transpose(logits, (1, 0, 2))


# ------------------------------- main ----------------------------------------
if __name__ == "__main__":
    # Hyperparameters (small, consistent with the module's forward):
    VOCAB = 50
    POS_VOCAB = 12
    EMB = 16
    POS_EMB = 16
    D = EMB + POS_EMB          # lstm_input_dim = 32
    H = 32                     # hidden_dim
    C = 8                      # num_classes
    B = 2                      # batch
    T = 8                      # sequence length

    key = jax.random.PRNGKey(0)
    ks = jax.random.split(key, 12)

    def init(k, shape, scale=0.1):
        return (scale * jax.random.normal(k, shape)).astype(jnp.float32)

    params = {
        "word_emb": init(ks[0], (VOCAB, EMB), 1.0),
        "pos_emb":  init(ks[1], (POS_VOCAB, POS_EMB), 1.0),
        # PyTorch LSTM weights are (4H, D)/(4H, H); stored pre-transposed for x @ W,
        # gate order [i, f, g, o] as in PyTorch.
        "wih_f": init(ks[2], (D, 4 * H)),
        "whh_f": init(ks[3], (H, 4 * H)),
        "b_f":   init(ks[4], (1, 4 * H)),      # b_ih + b_hh combined
        "wih_b": init(ks[5], (D, 4 * H)),
        "whh_b": init(ks[6], (H, 4 * H)),
        "b_b":   init(ks[7], (1, 4 * H)),
        # Linear classifier: PyTorch weight (C, 2H) stored transposed as (2H, C).
        "wc": init(ks[8], (2 * H, C)),
        "bc": init(ks[9], (1, C)),
    }

    x_ids = jax.random.randint(ks[10], (B, T), 0, VOCAB, dtype=jnp.int32)
    p_ids = jax.random.randint(ks[11], (B, T), 0, POS_VOCAB, dtype=jnp.int32)

    out = ner_forward(x_ids, p_ids, params)
    out = jax.block_until_ready(out)

    ref = ner_forward_ref(x_ids, p_ids, params)
    assert out.shape == (B, T, C), out.shape
    assert jnp.allclose(out, ref, atol=1e-5, rtol=1e-5), "mismatch vs pure-JAX reference"

    print("KERNEL_OK")
</pallas_src>

<mosaic_0001>
module attributes {stable_mosaic.version = 11 : i64} {
  func.func @_bilstm_cls_kernel(%arg0: memref<8x8x32xf32, #tpu.memory_space<vmem>>, %arg1: memref<32x256xf32, #tpu.memory_space<vmem>>, %arg2: memref<1x256xf32, #tpu.memory_space<vmem>>, %arg3: memref<32x128xf32, #tpu.memory_space<vmem>>, %arg4: memref<32x128xf32, #tpu.memory_space<vmem>>, %arg5: memref<32x128xf32, #tpu.memory_space<vmem>>, %arg6: memref<32x128xf32, #tpu.memory_space<vmem>>, %arg7: memref<1x128xf32, #tpu.memory_space<vmem>>, %arg8: memref<8x8x128xf32, #tpu.memory_space<vmem>>, %arg9: memref<8x8x256xf32, #tpu.memory_space<vmem>>, %arg10: memref<8x8x32xf32, #tpu.memory_space<vmem>>, %arg11: memref<8x8x32xf32, #tpu.memory_space<vmem>>) attributes {dimension_semantics = [], scalar_prefetch = 0 : i64, scratch_operands = 3 : i64, tpu.core_type = #tpu.core_type<tc>} {
    %c0 = arith.constant 0 : index
    %c0_0 = arith.constant 0 : index
    %c0_1 = arith.constant 0 : index
    %0 = vector.load %arg0[%c0, %c0_0, %c0_1] : memref<8x8x32xf32, #tpu.memory_space<vmem>>, vector<8x8x32xf32>
    %1 = vector.shape_cast %0 : vector<8x8x32xf32> to vector<64x32xf32>
    %c0_2 = arith.constant 0 : index
    %c0_3 = arith.constant 0 : index
    %2 = vector.load %arg1[%c0_2, %c0_3] : memref<32x256xf32, #tpu.memory_space<vmem>>, vector<32x256xf32>
    %cst = arith.constant dense<0.000000e+00> : vector<64x256xf32>
    %3 = tpu.matmul %1, %2, %cst {dimension_numbers = #tpu.dot_dimension_numbers<[1], [0], [0], [1], [0, 0, 1, 1], [], []>} : vector<64x32xf32>, vector<32x256xf32>, vector<64x256xf32> -> vector<64x256xf32>
    %c0_4 = arith.constant 0 : index
    %c0_5 = arith.constant 0 : index
    %4 = vector.load %arg2[%c0_4, %c0_5] : memref<1x256xf32, #tpu.memory_space<vmem>>, vector<1x256xf32>
    %5 = vector.broadcast %4 : vector<1x256xf32> to vector<64x256xf32>
    %6 = arith.addf %3, %5 : vector<64x256xf32>
    %7 = vector.shape_cast %6 : vector<64x256xf32> to vector<8x8x256xf32>
    %c0_6 = arith.constant 0 : index
    %c0_7 = arith.constant 0 : index
    %c0_8 = arith.constant 0 : index
    %8 = vector.load %arg9[%c0_6, %c0_7, %c0_8] : memref<8x8x256xf32, #tpu.memory_space<vmem>>, vector<8x8x256xf32>
    tpu.vector_store %arg9[%c0_6, %c0_7, %c0_8], %7 {strides = array<i32>} : memref<8x8x256xf32, #tpu.memory_space<vmem>>, vector<8x8x256xf32>,
    %c0_9 = arith.constant 0 : index
    %c0_10 = arith.constant 0 : index
    %9 = vector.load %arg3[%c0_9, %c0_10] : memref<32x128xf32, #tpu.memory_space<vmem>>, vector<32x128xf32>
    %c0_11 = arith.constant 0 : index
    %c0_12 = arith.constant 0 : index
    %10 = vector.load %arg4[%c0_11, %c0_12] : memref<32x128xf32, #tpu.memory_space<vmem>>, vector<32x128xf32>
    %cst_13 = arith.constant 0.000000e+00 : f32
    %11 = vector.broadcast %cst_13 : f32 to vector<8x32xf32>
    %c0_i32 = arith.constant 0 : i32
    %c7_i32 = arith.constant 7 : i32
    %12 = arith.subi %c7_i32, %c0_i32 : i32
    %13 = arith.index_cast %c0_i32 : i32 to index
    %c0_14 = arith.constant 0 : index
    %c0_15 = arith.constant 0 : index
    %14 = vector.load %arg9[%13, %c0_14, %c0_15] : memref<8x8x256xf32, #tpu.memory_space<vmem>>, vector<1x8x256xf32>
    %15 = vector.shape_cast %14 : vector<1x8x256xf32> to vector<8x256xf32>
    %16 = arith.index_cast %12 : i32 to index
    %c0_16 = arith.constant 0 : index
    %c0_17 = arith.constant 0 : index
    %17 = vector.load %arg9[%16, %c0_16, %c0_17] : memref<8x8x256xf32, #tpu.memory_space<vmem>>, vector<1x8x256xf32>
    %18 = vector.shape_cast %17 : vector<1x8x256xf32> to vector<8x256xf32>
    %19 = vector.extract_strided_slice %15 {offsets = [0, 0], sizes = [8, 128], strides = [1, 1]} : vector<8x256xf32> to vector<8x128xf32>
    %cst_18 = arith.constant dense<0.000000e+00> : vector<8x128xf32>
    %20 = tpu.matmul %11, %9, %cst_18 {dimension_numbers = #tpu.dot_dimension_numbers<[1], [0], [0], [1], [0, 0, 1, 1], [], []>} : vector<8x32xf32>, vector<32x128xf32>, vector<8x128xf32> -> vector<8x128xf32>
    %21 = arith.addf %19, %20 : vector<8x128xf32>
    %22 = arith.negf %21 : vector<8x128xf32>
    %23 = math.exp %22 : vector<8x128xf32>
    %cst_19 = arith.constant 1.000000e+00 : f32
    %24 = vector.broadcast %cst_19 : f32 to vector<8x128xf32>
    %25 = arith.addf %24, %23 : vector<8x128xf32>
    %26 = arith.divf %24, %25 : vector<8x128xf32>
    %27 = math.tanh %21 : vector<8x128xf32>
    %28 = vector.extract_strided_slice %26 {offsets = [0, 0], sizes = [8, 32], strides = [1, 1]} : vector<8x128xf32> to vector<8x32xf32>
    %29 = vector.extract_strided_slice %26 {offsets = [0, 32], sizes = [8, 32], strides = [1, 1]} : vector<8x128xf32> to vector<8x32xf32>
    %30 = vector.extract_strided_slice %27 {offsets = [0, 64], sizes = [8, 32], strides = [1, 1]} : vector<8x128xf32> to vector<8x32xf32>
    %31 = vector.extract_strided_slice %26 {offsets = [0, 96], sizes = [8, 32], strides = [1, 1]} : vector<8x128xf32> to vector<8x32xf32>
    %32 = arith.mulf %29, %11 : vector<8x32xf32>
    %33 = arith.mulf %28, %30 : vector<8x32xf32>
    %34 = arith.addf %32, %33 : vector<8x32xf32>
    %35 = math.tanh %34 : vector<8x32xf32>
    %36 = arith.mulf %31, %35 : vector<8x32xf32>
    %37 = arith.index_cast %c0_i32 : i32 to index
    %c0_20 = arith.constant 0 : index
    %c0_21 = arith.constant 0 : index
    %38 = vector.load %arg10[%37, %c0_20, %c0_21] : memref<8x8x32xf32, #tpu.memory_space<vmem>>, vector<1x8x32xf32>
    %39 = vector.shape_cast %38 : vector<1x8x32xf32> to vector<8x32xf32>
    %40 = vector.shape_cast %36 : vector<8x32xf32> to vector<1x8x32xf32>
    tpu.vector_store %arg10[%37, %c0_20, %c0_21], %40 {strides = array<i32>} : memref<8x8x32xf32, #tpu.memory_space<vmem>>, vector<1x8x32xf32>,
    %41 = vector.extract_strided_slice %18 {offsets = [0, 128], sizes = [8, 128], strides = [1, 1]} : vector<8x256xf32> to vector<8x128xf32>
    %cst_22 = arith.constant dense<0.000000e+00> : vector<8x128xf32>
    %42 = tpu.matmul %11, %10, %cst_22 {dimension_numbers = #tpu.dot_dimension_numbers<[1], [0], [0], [1], [0, 0, 1, 1], [], []>} : vector<8x32xf32>, vector<32x128xf32>, vector<8x128xf32> -> vector<8x128xf32>
    %43 = arith.addf %41, %42 : vector<8x128xf32>
    %44 = arith.negf %43 : vector<8x128xf32>
    %45 = math.exp %44 : vector<8x128xf32>
    %cst_23 = arith.constant 1.000000e+00 : f32
    %46 = vector.broadcast %cst_23 : f32 to vector<8x128xf32>
    %47 = arith.addf %46, %45 : vector<8x128xf32>
    %48 = arith.divf %46, %47 : vector<8x128xf32>
    %49 = math.tanh %43 : vector<8x128xf32>
    %50 = vector.extract_strided_slice %48 {offsets = [0, 0], sizes = [8, 32], strides = [1, 1]} : vector<8x128xf32> to vector<8x32xf32>
    %51 = vector.extract_strided_slice %48 {offsets = [0, 32], sizes = [8, 32], strides = [1, 1]} : vector<8x128xf32> to vector<8x32xf32>
    %52 = vector.extract_strided_slice %49 {offsets = [0, 64], sizes = [8, 32], strides = [1, 1]} : vector<8x128xf32> to vector<8x32xf32>
    %53 = vector.extract_strided_slice %48 {offsets = [0, 96], sizes = [8, 32], strides = [1, 1]} : vector<8x128xf32> to vector<8x32xf32>
    %54 = arith.mulf %51, %11 : vector<8x32xf32>
    %55 = arith.mulf %50, %52 : vector<8x32xf32>
    %56 = arith.addf %54, %55 : vector<8x32xf32>
    %57 = math.tanh %56 : vector<8x32xf32>
    %58 = arith.mulf %53, %57 : vector<8x32xf32>
    %59 = arith.index_cast %12 : i32 to index
    %c0_24 = arith.constant 0 : index
    %c0_25 = arith.constant 0 : index
    %60 = vector.load %arg11[%59, %c0_24, %c0_25] : memref<8x8x32xf32, #tpu.memory_space<vmem>>, vector<1x8x32xf32>
    %61 = vector.shape_cast %60 : vector<1x8x32xf32> to vector<8x32xf32>
    %62 = vector.shape_cast %58 : vector<8x32xf32> to vector<1x8x32xf32>
    tpu.vector_store %arg11[%59, %c0_24, %c0_25], %62 {strides = array<i32>} : memref<8x8x32xf32, #tpu.memory_space<vmem>>, vector<1x8x32xf32>,
    %c1_i32 = arith.constant 1 : i32
    %c7_i32_26 = arith.constant 7 : i32
    %63 = arith.subi %c7_i32_26, %c1_i32 : i32
    %64 = arith.index_cast %c1_i32 : i32 to index
    %c0_27 = arith.constant 0 : index
    %c0_28 = arith.constant 0 : index
    %65 = vector.load %arg9[%64, %c0_27, %c0_28] : memref<8x8x256xf32, #tpu.memory_space<vmem>>, vector<1x8x256xf32>
    %66 = vector.shape_cast %65 : vector<1x8x256xf32> to vector<8x256xf32>
    %67 = arith.index_cast %63 : i32 to index
    %c0_29 = arith.constant 0 : index
    %c0_30 = arith.constant 0 : index
    %68 = vector.load %arg9[%67, %c0_29, %c0_30] : memref<8x8x256xf32, #tpu.memory_space<vmem>>, vector<1x8x256xf32>
    %69 = vector.shape_cast %68 : vector<1x8x256xf32> to vector<8x256xf32>
    %70 = vector.extract_strided_slice %66 {offsets = [0, 0], sizes = [8, 128], strides = [1, 1]} : vector<8x256xf32> to vector<8x128xf32>
    %cst_31 = arith.constant dense<0.000000e+00> : vector<8x128xf32>
    %71 = tpu.matmul %36, %9, %cst_31 {dimension_numbers = #tpu.dot_dimension_numbers<[1], [0], [0], [1], [0, 0, 1, 1], [], []>} : vector<8x32xf32>, vector<32x128xf32>, vector<8x128xf32> -> vector<8x128xf32>
    %72 = arith.addf %70, %71 : vector<8x128xf32>
    %73 = arith.negf %72 : vector<8x128xf32>
    %74 = math.exp %73 : vector<8x128xf32>
    %cst_32 = arith.constant 1.000000e+00 : f32
    %75 = vector.broadcast %cst_32 : f32 to vector<8x128xf32>
    %76 = arith.addf %75, %74 : vector<8x128xf32>
    %77 = arith.divf %75, %76 : vector<8x128xf32>
    %78 = math.tanh %72 : vector<8x128xf32>
    %79 = vector.extract_strided_slice %77 {offsets = [0, 0], sizes = [8, 32], strides = [1, 1]} : vector<8x128xf32> to vector<8x32xf32>
    %80 = vector.extract_strided_slice %77 {offsets = [0, 32], sizes = [8, 32], strides = [1, 1]} : vector<8x128xf32> to vector<8x32xf32>
    %81 = vector.extract_strided_slice %78 {offsets = [0, 64], sizes = [8, 32], strides = [1, 1]} : vector<8x128xf32> to vector<8x32xf32>
    %82 = vector.extract_strided_slice %77 {offsets = [0, 96], sizes = [8, 32], strides = [1, 1]} : vector<8x128xf32> to vector<8x32xf32>
    %83 = arith.mulf %80, %34 : vector<8x32xf32>
    %84 = arith.mulf %79, %81 : vector<8x32xf32>
    %85 = arith.addf %83, %84 : vector<8x32xf32>
    %86 = math.tanh %85 : vector<8x32xf32>
    %87 = arith.mulf %82, %86 : vector<8x32xf32>
    %88 = arith.index_cast %c1_i32 : i32 to index
    %c0_33 = arith.constant 0 : index
    %c0_34 = arith.constant 0 : index
    %89 = vector.load %arg10[%88, %c0_33, %c0_34] : memref<8x8x32xf32, #tpu.memory_space<vmem>>, vector<1x8x32xf32>
    %90 = vector.shape_cast %89 : vector<1x8x32xf32> to vector<8x32xf32>
    %91 = vector.shape_cast %87 : vector<8x32xf32> to vector<1x8x32xf32>
    tpu.vector_store %arg10[%88, %c0_33, %c0_34], %91 {strides = array<i32>} : memref<8x8x32xf32, #tpu.memory_space<vmem>>, vector<1x8x32xf32>,
    %92 = vector.extract_strided_slice %69 {offsets = [0, 128], sizes = [8, 128], strides = [1, 1]} : vector<8x256xf32> to vector<8x128xf32>
    %cst_35 = arith.constant dense<0.000000e+00> : vector<8x128xf32>
    %93 = tpu.matmul %58, %10, %cst_35 {dimension_numbers = #tpu.dot_dimension_numbers<[1], [0], [0], [1], [0, 0, 1, 1], [], []>} : vector<8x32xf32>, vector<32x128xf32>, vector<8x128xf32> -> vector<8x128xf32>
    %94 = arith.addf %92, %93 : vector<8x128xf32>
    %95 = arith.negf %94 : vector<8x128xf32>
    %96 = math.exp %95 : vector<8x128xf32>
    %cst_36 = arith.constant 1.000000e+00 : f32
    %97 = vector.broadcast %cst_36 : f32 to vector<8x128xf32>
    %98 = arith.addf %97, %96 : vector<8x128xf32>
    %99 = arith.divf %97, %98 : vector<8x128xf32>
    %100 = math.tanh %94 : vector<8x128xf32>
    %101 = vector.extract_strided_slice %99 {offsets = [0, 0], sizes = [8, 32], strides = [1, 1]} : vector<8x128xf32> to vector<8x32xf32>
    %102 = vector.extract_strided_slice %99 {offsets = [0, 32], sizes = [8, 32], strides = [1, 1]} : vector<8x128xf32> to vector<8x32xf32>
    %103 = vector.extract_strided_slice %100 {offsets = [0, 64], sizes = [8, 32], strides = [1, 1]} : vector<8x128xf32> to vector<8x32xf32>
    %104 = vector.extract_strided_slice %99 {offsets = [0, 96], sizes = [8, 32], strides = [1, 1]} : vector<8x128xf32> to vector<8x32xf32>
    %105 = arith.mulf %102, %56 : vector<8x32xf32>
    %106 = arith.mulf %101, %103 : vector<8x32xf32>
    %107 = arith.addf %105, %106 : vector<8x32xf32>
    %108 = math.tanh %107 : vector<8x32xf32>
    %109 = arith.mulf %104, %108 : vector<8x32xf32>
    %110 = arith.index_cast %63 : i32 to index
    %c0_37 = arith.constant 0 : index
    %c0_38 = arith.constant 0 : index
    %111 = vector.load %arg11[%110, %c0_37, %c0_38] : memref<8x8x32xf32, #tpu.memory_space<vmem>>, vector<1x8x32xf32>
    %112 = vector.shape_cast %111 : vector<1x8x32xf32> to vector<8x32xf32>
    %113 = vector.shape_cast %109 : vector<8x32xf32> to vector<1x8x32xf32>
    tpu.vector_store %arg11[%110, %c0_37, %c0_38], %113 {strides = array<i32>} : memref<8x8x32xf32, #tpu.memory_space<vmem>>, vector<1x8x32xf32>,
    %c2_i32 = arith.constant 2 : i32
    %c7_i32_39 = arith.constant 7 : i32
    %114 = arith.subi %c7_i32_39, %c2_i32 : i32
    %115 = arith.index_cast %c2_i32 : i32 to index
    %c0_40 = arith.constant 0 : index
    %c0_41 = arith.constant 0 : index
    %116 = vector.load %arg9[%115, %c0_40, %c0_41] : memref<8x8x256xf32, #tpu.memory_space<vmem>>, vector<1x8x256xf32>
    %117 = vector.shape_cast %116 : vector<1x8x256xf32> to vector<8x256xf32>
    %118 = arith.index_cast %114 : i32 to index
    %c0_42 = arith.constant 0 : index
    %c0_43 = arith.constant 0 : index
    %119 = vector.load %arg9[%118, %c0_42, %c0_43] : memref<8x8x256xf32, #tpu.memory_space<vmem>>, vector<1x8x256xf32>
    %120 = vector.shape_cast %119 : vector<1x8x256xf32> to vector<8x256xf32>
    %121 = vector.extract_strided_slice %117 {offsets = [0, 0], sizes = [8, 128], strides = [1, 1]} : vector<8x256xf32> to vector<8x128xf32>
    %cst_44 = arith.constant dense<0.000000e+00> : vector<8x128xf32>
    %122 = tpu.matmul %87, %9, %cst_44 {dimension_numbers = #tpu.dot_dimension_numbers<[1], [0], [0], [1], [0, 0, 1, 1], [], []>} : vector<8x32xf32>, vector<32x128xf32>, vector<8x128xf32> -> vector<8x128xf32>
    %123 = arith.addf %121, %122 : vector<8x128xf32>
    %124 = arith.negf %123 : vector<8x128xf32>
    %125 = math.exp %124 : vector<8x128xf32>
    %cst_45 = arith.constant 1.000000e+00 : f32
    %126 = vector.broadcast %cst_45 : f32 to vector<8x128xf32>
    %127 = arith.addf %126, %125 : vector<8x128xf32>
    %128 = arith.divf %126, %127 : vector<8x128xf32>
    %129 = math.tanh %123 : vector<8x128xf32>
    %130 = vector.extract_strided_slice %128 {offsets = [0, 0], sizes = [8, 32], strides = [1, 1]} : vector<8x128xf32> to vector<8x32xf32>
    %131 = vector.extract_strided_slice %128 {offsets = [0, 32], sizes = [8, 32], strides = [1, 1]} : vector<8x128xf32> to vector<8x32xf32>
    %132 = vector.extract_strided_slice %129 {offsets = [0, 64], sizes = [8, 32], strides = [1, 1]} : vector<8x128xf32> to vector<8x32xf32>
    %133 = vector.extract_strided_slice %128 {offsets = [0, 96], sizes = [8, 32], strides = [1, 1]} : vector<8x128xf32> to vector<8x32xf32>
    %134 = arith.mulf %131, %85 : vector<8x32xf32>
    %135 = arith.mulf %130, %132 : vector<8x32xf32>
    %136 = arith.addf %134, %135 : vector<8x32xf32>
    %137 = math.tanh %136 : vector<8x32xf32>
    %138 = arith.mulf %133, %137 : vector<8x32xf32>
    %139 = arith.index_cast %c2_i32 : i32 to index
    %c0_46 = arith.constant 0 : index
    %c0_47 = arith.constant 0 : index
    %140 = vector.load %arg10[%139, %c0_46, %c0_47] : memref<8x8x32xf32, #tpu.memory_space<vmem>>, vector<1x8x32xf32>
    %141 = vector.shape_cast %140 : vector<1x8x32xf32> to vector<8x32xf32>
    %142 = vector.shape_cast %138 : vector<8x32xf32> to vector<1x8x32xf32>
    tpu.vector_store %arg10[%139, %c0_46, %c0_47], %142 {strides = array<i32>} : memref<8x8x32xf32, #tpu.memory_space<vmem>>, vector<1x8x32xf32>,
    %143 = vector.extract_strided_slice %120 {offsets = [0, 128], sizes = [8, 128], strides = [1, 1]} : vector<8x256xf32> to vector<8x128xf32>
    %cst_48 = arith.constant dense<0.000000e+00> : vector<8x128xf32>
    %144 = tpu.matmul %109, %10, %cst_48 {dimension_numbers = #tpu.dot_dimension_numbers<[1], [0], [0], [1], [0, 0, 1, 1], [], []>} : vector<8x32xf32>, vector<32x128xf32>, vector<8x128xf32> -> vector<8x128xf32>
    %145 = arith.addf %143, %144 : vector<8x128xf32>
    %146 = arith.negf %145 : vector<8x128xf32>
    %147 = math.exp %146 : vector<8x128xf32>
    %cst_49 = arith.constant 1.000000e+00 : f32
    %148 = vector.broadcast %cst_49 : f32 to vector<8x128xf32>
    %149 = arith.addf %148, %147 : vector<8x128xf32>
    %150 = arith.divf %148, %149 : vector<8x128xf32>
    %151 = math.tanh %145 : vector<8x128xf32>
    %152 = vector.extract_strided_slice %150 {offsets = [0, 0], sizes = [8, 32], strides = [1, 1]} : vector<8x128xf32> to vector<8x32xf32>
    %153 = vector.extract_strided_slice %150 {offsets = [0, 32], sizes = [8, 32], strides = [1, 1]} : vector<8x128xf32> to vector<8x32xf32>
    %154 = vector.extract_strided_slice %151 {offsets = [0, 64], sizes = [8, 32], strides = [1, 1]} : vector<8x128xf32> to vector<8x32xf32>
    %155 = vector.extract_strided_slice %150 {offsets = [0, 96], sizes = [8, 32], strides = [1, 1]} : vector<8x128xf32> to vector<8x32xf32>
    %156 = arith.mulf %153, %107 : vector<8x32xf32>
    %157 = arith.mulf %152, %154 : vector<8x32xf32>
    %158 = arith.addf %156, %157 : vector<8x32xf32>
    %159 = math.tanh %158 : vector<8x32xf32>
    %160 = arith.mulf %155, %159 : vector<8x32xf32>
    %161 = arith.index_cast %114 : i32 to index
    %c0_50 = arith.constant 0 : index
    %c0_51 = arith.constant 0 : index
    %162 = vector.load %arg11[%161, %c0_50, %c0_51] : memref<8x8x32xf32, #tpu.memory_space<vmem>>, vector<1x8x32xf32>
    %163 = vector.shape_cast %162 : vector<1x8x32xf32> to vector<8x32xf32>
    %164 = vector.shape_cast %160 : vector<8x32xf32> to vector<1x8x32xf32>
    tpu.vector_store %arg11[%161, %c0_50, %c0_51], %164 {strides = array<i32>} : memref<8x8x32xf32, #tpu.memory_space<vmem>>, vector<1x8x32xf32>,
    %c3_i32 = arith.constant 3 : i32
    %c7_i32_52 = arith.constant 7 : i32
    %165 = arith.subi %c7_i32_52, %c3_i32 : i32
    %166 = arith.index_cast %c3_i32 : i32 to index
    %c0_53 = arith.constant 0 : index
    %c0_54 = arith.constant 0 : index
    %167 = vector.load %arg9[%166, %c0_53, %c0_54] : memref<8x8x256xf32, #tpu.memory_space<vmem>>, vector<1x8x256xf32>
    %168 = vector.shape_cast %167 : vector<1x8x256xf32> to vector<8x256xf32>
    %169 = arith.index_cast %165 : i32 to index
    %c0_55 = arith.constant 0 : index
    %c0_56 = arith.constant 0 : index
    %170 = vector.load %arg9[%169, %c0_55, %c0_56] : memref<8x8x256xf32, #tpu.memory_space<vmem>>, vector<1x8x256xf32>
    %171 = vector.shape_cast %170 : vector<1x8x256xf32> to vector<8x256xf32>
    %172 = vector.extract_strided_slice %168 {offsets = [0, 0], sizes = [8, 128], strides = [1, 1]} : vector<8x256xf32> to vector<8x128xf32>
    %cst_57 = arith.constant dense<0.000000e+00> : vector<8x128xf32>
    %173 = tpu.matmul %138, %9, %cst_57 {dimension_numbers = #tpu.dot_dimension_numbers<[1], [0], [0], [1], [0, 0, 1, 1], [], []>} : vector<8x32xf32>, vector<32x128xf32>, vector<8x128xf32> -> vector<8x128xf32>
    %174 = arith.addf %172, %173 : vector<8x128xf32>
    %175 = arith.negf %174 : vector<8x128xf32>
    %176 = math.exp %175 : vector<8x128xf32>
    %cst_58 = arith.constant 1.000000e+00 : f32
    %177 = vector.broadcast %cst_58 : f32 to vector<8x128xf32>
    %178 = arith.addf %177, %176 : vector<8x128xf32>
    %179 = arith.divf %177, %178 : vector<8x128xf32>
    %180 = math.tanh %174 : vector<8x128xf32>
    %181 = vector.extract_strided_slice %179 {offsets = [0, 0], sizes = [8, 32], strides = [1, 1]} : vector<8x128xf32> to vector<8x32xf32>
    %182 = vector.extract_strided_slice %179 {offsets = [0, 32], sizes = [8, 32], strides = [1, 1]} : vector<8x128xf32> to vector<8x32xf32>
    %183 = vector.extract_strided_slice %180 {offsets = [0, 64], sizes = [8, 32], strides = [1, 1]} : vector<8x128xf32> to vector<8x32xf32>
    %184 = vector.extract_strided_slice %179 {offsets = [0, 96], sizes = [8, 32], strides = [1, 1]} : vector<8x128xf32> to vector<8x32xf32>
    %185 = arith.mulf %182, %136 : vector<8x32xf32>
    %186 = arith.mulf %181, %183 : vector<8x32xf32>
    %187 = arith.addf %185, %186 : vector<8x32xf32>
    %188 = math.tanh %187 : vector<8x32xf32>
    %189 = arith.mulf %184, %188 : vector<8x32xf32>
    %190 = arith.index_cast %c3_i32 : i32 to index
    %c0_59 = arith.constant 0 : index
    %c0_60 = arith.constant 0 : index
    %191 = vector.load %arg10[%190, %c0_59, %c0_60] : memref<8x8x32xf32, #tpu.memory_space<vmem>>, vector<1x8x32xf32>
    %192 = vector.shape_cast %191 : vector<1x8x32xf32> to vector<8x32xf32>
    %193 = vector.shape_cast %189 : vector<8x32xf32> to vector<1x8x32xf32>
    tpu.vector_store %arg10[%190, %c0_59, %c0_60], %193 {strides = array<i32>} : memref<8x8x32xf32, #tpu.memory_space<vmem>>, vector<1x8x32xf32>,
    %194 = vector.extract_strided_slice %171 {offsets = [0, 128], sizes = [8, 128], strides = [1, 1]} : vector<8x256xf32> to vector<8x128xf32>
    %cst_61 = arith.constant dense<0.000000e+00> : vector<8x128xf32>
    %195 = tpu.matmul %160, %10, %cst_61 {dimension_numbers = #tpu.dot_dimension_numbers<[1], [0], [0], [1], [0, 0, 1, 1], [], []>} : vector<8x32xf32>, vector<32x128xf32>, vector<8x128xf32> -> vector<8x128xf32>
    %196 = arith.addf %194, %195 : vector<8x128xf32>
    %197 = arith.negf %196 : vector<8x128xf32>
    %198 = math.exp %197 : vector<8x128xf32>
    %cst_62 = arith.constant 1.000000e+00 : f32
    %199 = vector.broadcast %cst_62 : f32 to vector<8x128xf32>
    %200 = arith.addf %199, %198 : vector<8x128xf32>
    %201 = arith.divf %199, %200 : vector<8x128xf32>
    %202 = math.tanh %196 : vector<8x128xf32>
    %203 = vector.extract_strided_slice %201 {offsets = [0, 0], sizes = [8, 32], strides = [1, 1]} : vector<8x128xf32> to vector<8x32xf32>
    %204 = vector.extract_strided_slice %201 {offsets = [0, 32], sizes = [8, 32], strides = [1, 1]} : vector<8x128xf32> to vector<8x32xf32>
    %205 = vector.extract_strided_slice %202 {offsets = [0, 64], sizes = [8, 32], strides = [1, 1]} : vector<8x128xf32> to vector<8x32xf32>
    %206 = vector.extract_strided_slice %201 {offsets = [0, 96], sizes = [8, 32], strides = [1, 1]} : vector<8x128xf32> to vector<8x32xf32>
    %207 = arith.mulf %204, %158 : vector<8x32xf32>
    %208 = arith.mulf %203, %205 : vector<8x32xf32>
    %209 = arith.addf %207, %208 : vector<8x32xf32>
    %210 = math.tanh %209 : vector<8x32xf32>
    %211 = arith.mulf %206, %210 : vector<8x32xf32>
    %212 = arith.index_cast %165 : i32 to index
    %c0_63 = arith.constant 0 : index
    %c0_64 = arith.constant 0 : index
    %213 = vector.load %arg11[%212, %c0_63, %c0_64] : memref<8x8x32xf32, #tpu.memory_space<vmem>>, vector<1x8x32xf32>
    %214 = vector.shape_cast %213 : vector<1x8x32xf32> to vector<8x32xf32>
    %215 = vector.shape_cast %211 : vector<8x32xf32> to vector<1x8x32xf32>
    tpu.vector_store %arg11[%212, %c0_63, %c0_64], %215 {strides = array<i32>} : memref<8x8x32xf32, #tpu.memory_space<vmem>>, vector<1x8x32xf32>,
    %c4_i32 = arith.constant 4 : i32
    %c7_i32_65 = arith.constant 7 : i32
    %216 = arith.subi %c7_i32_65, %c4_i32 : i32
    %217 = arith.index_cast %c4_i32 : i32 to index
    %c0_66 = arith.constant 0 : index
    %c0_67 = arith.constant 0 : index
    %218 = vector.load %arg9[%217, %c0_66, %c0_67] : memref<8x8x256xf32, #tpu.memory_space<vmem>>, vector<1x8x256xf32>
    %219 = vector.shape_cast %218 : vector<1x8x256xf32> to vector<8x256xf32>
    %220 = arith.index_cast %216 : i32 to index
    %c0_68 = arith.constant 0 : index
    %c0_69 = arith.constant 0 : index
    %221 = vector.load %arg9[%220, %c0_68, %c0_69] : memref<8x8x256xf32, #tpu.memory_space<vmem>>, vector<1x8x256xf32>
    %222 = vector.shape_cast %221 : vector<1x8x256xf32> to vector<8x256xf32>
    %223 = vector.extract_strided_slice %219 {offsets = [0, 0], sizes = [8, 128], strides = [1, 1]} : vector<8x256xf32> to vector<8x128xf32>
    %cst_70 = arith.constant dense<0.000000e+00> : vector<8x128xf32>
    %224 = tpu.matmul %189, %9, %cst_70 {dimension_numbers = #tpu.dot_dimension_numbers<[1], [0], [0], [1], [0, 0, 1, 1], [], []>} : vector<8x32xf32>, vector<32x128xf32>, vector<8x128xf32> -> vector<8x128xf32>
    %225 = arith.addf %223, %224 : vector<8x128xf32>
    %226 = arith.negf %225 : vector<8x128xf32>
    %227 = math.exp %226 : vector<8x128xf32>
    %cst_71 = arith.constant 1.000000e+00 : f32
    %228 = vector.broadcast %cst_71 : f32 to vector<8x128xf32>
    %229 = arith.addf %228, %227 : vector<8x128xf32>
    %230 = arith.divf %228, %229 : vector<8x128xf32>
    %231 = math.tanh %225 : vector<8x128xf32>
    %232 = vector.extract_strided_slice %230 {offsets = [0, 0], sizes = [8, 32], strides = [1, 1]} : vector<8x128xf32> to vector<8x32xf32>
    %233 = vector.extract_strided_slice %230 {offsets = [0, 32], sizes = [8, 32], strides = [1, 1]} : vector<8x128xf32> to vector<8x32xf32>
    %234 = vector.extract_strided_slice %231 {offsets = [0, 64], sizes = [8, 32], strides = [1, 1]} : vector<8x128xf32> to vector<8x32xf32>
    %235 = vector.extract_strided_slice %230 {offsets = [0, 96], sizes = [8, 32], strides = [1, 1]} : vector<8x128xf32> to vector<8x32xf32>
    %236 = arith.mulf %233, %187 : vector<8x32xf32>
    %237 = arith.mulf %232, %234 : vector<8x32xf32>
    %238 = arith.addf %236, %237 : vector<8x32xf32>
    %239 = math.tanh %238 : vector<8x32xf32>
    %240 = arith.mulf %235, %239 : vector<8x32xf32>
    %241 = arith.index_cast %c4_i32 : i32 to index
    %c0_72 = arith.constant 0 : index
    %c0_73 = arith.constant 0 : index
    %242 = vector.load %arg10[%241, %c0_72, %c0_73] : memref<8x8x32xf32, #tpu.memory_space<vmem>>, vector<1x8x32xf32>
    %243 = vector.shape_cast %242 : vector<1x8x32xf32> to vector<8x32xf32>
    %244 = vector.shape_cast %240 : vector<8x32xf32> to vector<1x8x32xf32>
    tpu.vector_store %arg10[%241, %c0_72, %c0_73], %244 {strides = array<i32>} : memref<8x8x32xf32, #tpu.memory_space<vmem>>, vector<1x8x32xf32>,
    %245 = vector.extract_strided_slice %222 {offsets = [0, 128], sizes = [8, 128], strides = [1, 1]} : vector<8x256xf32> to vector<8x128xf32>
    %cst_74 = arith.constant dense<0.000000e+00> : vector<8x128xf32>
    %246 = tpu.matmul %211, %10, %cst_74 {dimension_numbers = #tpu.dot_dimension_numbers<[1], [0], [0], [1], [0, 0, 1, 1], [], []>} : vector<8x32xf32>, vector<32x128xf32>, vector<8x128xf32> -> vector<8x128xf32>
    %247 = arith.addf %245, %246 : vector<8x128xf32>
    %248 = arith.negf %247 : vector<8x128xf32>
    %249 = math.exp %248 : vector<8x128xf32>
    %cst_75 = arith.constant 1.000000e+00 : f32
    %250 = vector.broadcast %cst_75 : f32 to vector<8x128xf32>
    %251 = arith.addf %250, %249 : vector<8x128xf32>
    %252 = arith.divf %250, %251 : vector<8x128xf32>
    %253 = math.tanh %247 : vector<8x128xf32>
    %254 = vector.extract_strided_slice %252 {offsets = [0, 0], sizes = [8, 32], strides = [1, 1]} : vector<8x128xf32> to vector<8x32xf32>
    %255 = vector.extract_strided_slice %252 {offsets = [0, 32], sizes = [8, 32], strides = [1, 1]} : vector<8x128xf32> to vector<8x32xf32>
    %256 = vector.extract_strided_slice %253 {offsets = [0, 64], sizes = [8, 32], strides = [1, 1]} : vector<8x128xf32> to vector<8x32xf32>
    %257 = vector.extract_strided_slice %252 {offsets = [0, 96], sizes = [8, 32], strides = [1, 1]} : vector<8x128xf32> to vector<8x32xf32>
    %258 = arith.mulf %255, %209 : vector<8x32xf32>
    %259 = arith.mulf %254, %256 : vector<8x32xf32>
    %260 = arith.addf %258, %259 : vector<8x32xf32>
    %261 = math.tanh %260 : vector<8x32xf32>
    %262 = arith.mulf %257, %261 : vector<8x32xf32>
    %263 = arith.index_cast %216 : i32 to index
    %c0_76 = arith.constant 0 : index
    %c0_77 = arith.constant 0 : index
    %264 = vector.load %arg11[%263, %c0_76, %c0_77] : memref<8x8x32xf32, #tpu.memory_space<vmem>>, vector<1x8x32xf32>
    %265 = vector.shape_cast %264 : vector<1x8x32xf32> to vector<8x32xf32>
    %266 = vector.shape_cast %262 : vector<8x32xf32> to vector<1x8x32xf32>
    tpu.vector_store %arg11[%263, %c0_76, %c0_77], %266 {strides = array<i32>} : memref<8x8x32xf32, #tpu.memory_space<vmem>>, vector<1x8x32xf32>,
    %c5_i32 = arith.constant 5 : i32
    %c7_i32_78 = arith.constant 7 : i32
    %267 = arith.subi %c7_i32_78, %c5_i32 : i32
    %268 = arith.index_cast %c5_i32 : i32 to index
    %c0_79 = arith.constant 0 : index
    %c0_80 = arith.constant 0 : index
    %269 = vector.load %arg9[%268, %c0_79, %c0_80] : memref<8x8x256xf32, #tpu.memory_space<vmem>>, vector<1x8x256xf32>
    %270 = vector.shape_cast %269 : vector<1x8x256xf32> to vector<8x256xf32>
    %271 = arith.index_cast %267 : i32 to index
    %c0_81 = arith.constant 0 : index
    %c0_82 = arith.constant 0 : index
    %272 = vector.load %arg9[%271, %c0_81, %c0_82] : memref<8x8x256xf32, #tpu.memory_space<vmem>>, vector<1x8x256xf32>
    %273 = vector.shape_cast %272 : vector<1x8x256xf32> to vector<8x256xf32>
    %274 = vector.extract_strided_slice %270 {offsets = [0, 0], sizes = [8, 128], strides = [1, 1]} : vector<8x256xf32> to vector<8x128xf32>
    %cst_83 = arith.constant dense<0.000000e+00> : vector<8x128xf32>
    %275 = tpu.matmul %240, %9, %cst_83 {dimension_numbers = #tpu.dot_dimension_numbers<[1], [0], [0], [1], [0, 0, 1, 1], [], []>} : vector<8x32xf32>, vector<32x128xf32>, vector<8x128xf32> -> vector<8x128xf32>
    %276 = arith.addf %274, %275 : vector<8x128xf32>
    %277 = arith.negf %276 : vector<8x128xf32>
    %278 = math.exp %277 : vector<8x128xf32>
    %cst_84 = arith.constant 1.000000e+00 : f32
    %279 = vector.broadcast %cst_84 : f32 to vector<8x128xf32>
    %280 = arith.addf %279, %278 : vector<8x128xf32>
    %281 = arith.divf %279, %280 : vector<8x128xf32>
    %282 = math.tanh %276 : vector<8x128xf32>
    %283 = vector.extract_strided_slice %281 {offsets = [0, 0], sizes = [8, 32], strides = [1, 1]} : vector<8x128xf32> to vector<8x32xf32>
    %284 = vector.extract_strided_slice %281 {offsets = [0, 32], sizes = [8, 32], strides = [1, 1]} : vector<8x128xf32> to vector<8x32xf32>
    %285 = vector.extract_strided_slice %282 {offsets = [0, 64], sizes = [8, 32], strides = [1, 1]} : vector<8x128xf32> to vector<8x32xf32>
    %286 = vector.extract_strided_slice %281 {offsets = [0, 96], sizes = [8, 32], strides = [1, 1]} : vector<8x128xf32> to vector<8x32xf32>
    %287 = arith.mulf %284, %238 : vector<8x32xf32>
    %288 = arith.mulf %283, %285 : vector<8x32xf32>
    %289 = arith.addf %287, %288 : vector<8x32xf32>
    %290 = math.tanh %289 : vector<8x32xf32>
    %291 = arith.mulf %286, %290 : vector<8x32xf32>
    %292 = arith.index_cast %c5_i32 : i32 to index
    %c0_85 = arith.constant 0 : index
    %c0_86 = arith.constant 0 : index
    %293 = vector.load %arg10[%292, %c0_85, %c0_86] : memref<8x8x32xf32, #tpu.memory_space<vmem>>, vector<1x8x32xf32>
    %294 = vector.shape_cast %293 : vector<1x8x32xf32> to vector<8x32xf32>
    %295 = vector.shape_cast %291 : vector<8x32xf32> to vector<1x8x32xf32>
    tpu.vector_store %arg10[%292, %c0_85, %c0_86], %295 {strides = array<i32>} : memref<8x8x32xf32, #tpu.memory_space<vmem>>, vector<1x8x32xf32>,
    %296 = vector.extract_strided_slice %273 {offsets = [0, 128], sizes = [8, 128], strides = [1, 1]} : vector<8x256xf32> to vector<8x128xf32>
    %cst_87 = arith.constant dense<0.000000e+00> : vector<8x128xf32>
    %297 = tpu.matmul %262, %10, %cst_87 {dimension_numbers = #tpu.dot_dimension_numbers<[1], [0], [0], [1], [0, 0, 1, 1], [], []>} : vector<8x32xf32>, vector<32x128xf32>, vector<8x128xf32> -> vector<8x128xf32>
    %298 = arith.addf %296, %297 : vector<8x128xf32>
    %299 = arith.negf %298 : vector<8x128xf32>
    %300 = math.exp %299 : vector<8x128xf32>
    %cst_88 = arith.constant 1.000000e+00 : f32
    %301 = vector.broadcast %cst_88 : f32 to vector<8x128xf32>
    %302 = arith.addf %301, %300 : vector<8x128xf32>
    %303 = arith.divf %301, %302 : vector<8x128xf32>
    %304 = math.tanh %298 : vector<8x128xf32>
    %305 = vector.extract_strided_slice %303 {offsets = [0, 0], sizes = [8, 32], strides = [1, 1]} : vector<8x128xf32> to vector<8x32xf32>
    %306 = vector.extract_strided_slice %303 {offsets = [0, 32], sizes = [8, 32], strides = [1, 1]} : vector<8x128xf32> to vector<8x32xf32>
    %307 = vector.extract_strided_slice %304 {offsets = [0, 64], sizes = [8, 32], strides = [1, 1]} : vector<8x128xf32> to vector<8x32xf32>
    %308 = vector.extract_strided_slice %303 {offsets = [0, 96], sizes = [8, 32], strides = [1, 1]} : vector<8x128xf32> to vector<8x32xf32>
    %309 = arith.mulf %306, %260 : vector<8x32xf32>
    %310 = arith.mulf %305, %307 : vector<8x32xf32>
    %311 = arith.addf %309, %310 : vector<8x32xf32>
    %312 = math.tanh %311 : vector<8x32xf32>
    %313 = arith.mulf %308, %312 : vector<8x32xf32>
    %314 = arith.index_cast %267 : i32 to index
    %c0_89 = arith.constant 0 : index
    %c0_90 = arith.constant 0 : index
    %315 = vector.load %arg11[%314, %c0_89, %c0_90] : memref<8x8x32xf32, #tpu.memory_space<vmem>>, vector<1x8x32xf32>
    %316 = vector.shape_cast %315 : vector<1x8x32xf32> to vector<8x32xf32>
    %317 = vector.shape_cast %313 : vector<8x32xf32> to vector<1x8x32xf32>
    tpu.vector_store %arg11[%314, %c0_89, %c0_90], %317 {strides = array<i32>} : memref<8x8x32xf32, #tpu.memory_space<vmem>>, vector<1x8x32xf32>,
    %c6_i32 = arith.constant 6 : i32
    %c7_i32_91 = arith.constant 7 : i32
    %318 = arith.subi %c7_i32_91, %c6_i32 : i32
    %319 = arith.index_cast %c6_i32 : i32 to index
    %c0_92 = arith.constant 0 : index
    %c0_93 = arith.constant 0 : index
    %320 = vector.load %arg9[%319, %c0_92, %c0_93] : memref<8x8x256xf32, #tpu.memory_space<vmem>>, vector<1x8x256xf32>
    %321 = vector.shape_cast %320 : vector<1x8x256xf32> to vector<8x256xf32>
    %322 = arith.index_cast %318 : i32 to index
    %c0_94 = arith.constant 0 : index
    %c0_95 = arith.constant 0 : index
    %323 = vector.load %arg9[%322, %c0_94, %c0_95] : memref<8x8x256xf32, #tpu.memory_space<vmem>>, vector<1x8x256xf32>
    %324 = vector.shape_cast %323 : vector<1x8x256xf32> to vector<8x256xf32>
    %325 = vector.extract_strided_slice %321 {offsets = [0, 0], sizes = [8, 128], strides = [1, 1]} : vector<8x256xf32> to vector<8x128xf32>
    %cst_96 = arith.constant dense<0.000000e+00> : vector<8x128xf32>
    %326 = tpu.matmul %291, %9, %cst_96 {dimension_numbers = #tpu.dot_dimension_numbers<[1], [0], [0], [1], [0, 0, 1, 1], [], []>} : vector<8x32xf32>, vector<32x128xf32>, vector<8x128xf32> -> vector<8x128xf32>
    %327 = arith.addf %325, %326 : vector<8x128xf32>
    %328 = arith.negf %327 : vector<8x128xf32>
    %329 = math.exp %328 : vector<8x128xf32>
    %cst_97 = arith.constant 1.000000e+00 : f32
    %330 = vector.broadcast %cst_97 : f32 to vector<8x128xf32>
    %331 = arith.addf %330, %329 : vector<8x128xf32>
    %332 = arith.divf %330, %331 : vector<8x128xf32>
    %333 = math.tanh %327 : vector<8x128xf32>
    %334 = vector.extract_strided_slice %332 {offsets = [0, 0], sizes = [8, 32], strides = [1, 1]} : vector<8x128xf32> to vector<8x32xf32>
    %335 = vector.extract_strided_slice %332 {offsets = [0, 32], sizes = [8, 32], strides = [1, 1]} : vector<8x128xf32> to vector<8x32xf32>
    %336 = vector.extract_strided_slice %333 {offsets = [0, 64], sizes = [8, 32], strides = [1, 1]} : vector<8x128xf32> to vector<8x32xf32>
    %337 = vector.extract_strided_slice %332 {offsets = [0, 96], sizes = [8, 32], strides = [1, 1]} : vector<8x128xf32> to vector<8x32xf32>
    %338 = arith.mulf %335, %289 : vector<8x32xf32>
    %339 = arith.mulf %334, %336 : vector<8x32xf32>
    %340 = arith.addf %338, %339 : vector<8x32xf32>
    %341 = math.tanh %340 : vector<8x32xf32>
    %342 = arith.mulf %337, %341 : vector<8x32xf32>
    %343 = arith.index_cast %c6_i32 : i32 to index
    %c0_98 = arith.constant 0 : index
    %c0_99 = arith.constant 0 : index
    %344 = vector.load %arg10[%343, %c0_98, %c0_99] : memref<8x8x32xf32, #tpu.memory_space<vmem>>, vector<1x8x32xf32>
    %345 = vector.shape_cast %344 : vector<1x8x32xf32> to vector<8x32xf32>
    %346 = vector.shape_cast %342 : vector<8x32xf32> to vector<1x8x32xf32>
    tpu.vector_store %arg10[%343, %c0_98, %c0_99], %346 {strides = array<i32>} : memref<8x8x32xf32, #tpu.memory_space<vmem>>, vector<1x8x32xf32>,
    %347 = vector.extract_strided_slice %324 {offsets = [0, 128], sizes = [8, 128], strides = [1, 1]} : vector<8x256xf32> to vector<8x128xf32>
    %cst_100 = arith.constant dense<0.000000e+00> : vector<8x128xf32>
    %348 = tpu.matmul %313, %10, %cst_100 {dimension_numbers = #tpu.dot_dimension_numbers<[1], [0], [0], [1], [0, 0, 1, 1], [], []>} : vector<8x32xf32>, vector<32x128xf32>, vector<8x128xf32> -> vector<8x128xf32>
    %349 = arith.addf %347, %348 : vector<8x128xf32>
    %350 = arith.negf %349 : vector<8x128xf32>
    %351 = math.exp %350 : vector<8x128xf32>
    %cst_101 = arith.constant 1.000000e+00 : f32
    %352 = vector.broadcast %cst_101 : f32 to vector<8x128xf32>
    %353 = arith.addf %352, %351 : vector<8x128xf32>
    %354 = arith.divf %352, %353 : vector<8x128xf32>
    %355 = math.tanh %349 : vector<8x128xf32>
    %356 = vector.extract_strided_slice %354 {offsets = [0, 0], sizes = [8, 32], strides = [1, 1]} : vector<8x128xf32> to vector<8x32xf32>
    %357 = vector.extract_strided_slice %354 {offsets = [0, 32], sizes = [8, 32], strides = [1, 1]} : vector<8x128xf32> to vector<8x32xf32>
    %358 = vector.extract_strided_slice %355 {offsets = [0, 64], sizes = [8, 32], strides = [1, 1]} : vector<8x128xf32> to vector<8x32xf32>
    %359 = vector.extract_strided_slice %354 {offsets = [0, 96], sizes = [8, 32], strides = [1, 1]} : vector<8x128xf32> to vector<8x32xf32>
    %360 = arith.mulf %357, %311 : vector<8x32xf32>
    %361 = arith.mulf %356, %358 : vector<8x32xf32>
    %362 = arith.addf %360, %361 : vector<8x32xf32>
    %363 = math.tanh %362 : vector<8x32xf32>
    %364 = arith.mulf %359, %363 : vector<8x32xf32>
    %365 = arith.index_cast %318 : i32 to index
    %c0_102 = arith.constant 0 : index
    %c0_103 = arith.constant 0 : index
    %366 = vector.load %arg11[%365, %c0_102, %c0_103] : memref<8x8x32xf32, #tpu.memory_space<vmem>>, vector<1x8x32xf32>
    %367 = vector.shape_cast %366 : vector<1x8x32xf32> to vector<8x32xf32>
    %368 = vector.shape_cast %364 : vector<8x32xf32> to vector<1x8x32xf32>
    tpu.vector_store %arg11[%365, %c0_102, %c0_103], %368 {strides = array<i32>} : memref<8x8x32xf32, #tpu.memory_space<vmem>>, vector<1x8x32xf32>,
    %c7_i32_104 = arith.constant 7 : i32
    %c7_i32_105 = arith.constant 7 : i32
    %369 = arith.subi %c7_i32_105, %c7_i32_104 : i32
    %370 = arith.index_cast %c7_i32_104 : i32 to index
    %c0_106 = arith.constant 0 : index
    %c0_107 = arith.constant 0 : index
    %371 = vector.load %arg9[%370, %c0_106, %c0_107] : memref<8x8x256xf32, #tpu.memory_space<vmem>>, vector<1x8x256xf32>
    %372 = vector.shape_cast %371 : vector<1x8x256xf32> to vector<8x256xf32>
    %373 = arith.index_cast %369 : i32 to index
    %c0_108 = arith.constant 0 : index
    %c0_109 = arith.constant 0 : index
    %374 = vector.load %arg9[%373, %c0_108, %c0_109] : memref<8x8x256xf32, #tpu.memory_space<vmem>>, vector<1x8x256xf32>
    %375 = vector.shape_cast %374 : vector<1x8x256xf32> to vector<8x256xf32>
    %376 = vector.extract_strided_slice %372 {offsets = [0, 0], sizes = [8, 128], strides = [1, 1]} : vector<8x256xf32> to vector<8x128xf32>
    %cst_110 = arith.constant dense<0.000000e+00> : vector<8x128xf32>
    %377 = tpu.matmul %342, %9, %cst_110 {dimension_numbers = #tpu.dot_dimension_numbers<[1], [0], [0], [1], [0, 0, 1, 1], [], []>} : vector<8x32xf32>, vector<32x128xf32>, vector<8x128xf32> -> vector<8x128xf32>
    %378 = arith.addf %376, %377 : vector<8x128xf32>
    %379 = arith.negf %378 : vector<8x128xf32>
    %380 = math.exp %379 : vector<8x128xf32>
    %cst_111 = arith.constant 1.000000e+00 : f32
    %381 = vector.broadcast %cst_111 : f32 to vector<8x128xf32>
    %382 = arith.addf %381, %380 : vector<8x128xf32>
    %383 = arith.divf %381, %382 : vector<8x128xf32>
    %384 = math.tanh %378 : vector<8x128xf32>
    %385 = vector.extract_strided_slice %383 {offsets = [0, 0], sizes = [8, 32], strides = [1, 1]} : vector<8x128xf32> to vector<8x32xf32>
    %386 = vector.extract_strided_slice %383 {offsets = [0, 32], sizes = [8, 32], strides = [1, 1]} : vector<8x128xf32> to vector<8x32xf32>
    %387 = vector.extract_strided_slice %384 {offsets = [0, 64], sizes = [8, 32], strides = [1, 1]} : vector<8x128xf32> to vector<8x32xf32>
    %388 = vector.extract_strided_slice %383 {offsets = [0, 96], sizes = [8, 32], strides = [1, 1]} : vector<8x128xf32> to vector<8x32xf32>
    %389 = arith.mulf %386, %340 : vector<8x32xf32>
    %390 = arith.mulf %385, %387 : vector<8x32xf32>
    %391 = arith.addf %389, %390 : vector<8x32xf32>
    %392 = math.tanh %391 : vector<8x32xf32>
    %393 = arith.mulf %388, %392 : vector<8x32xf32>
    %394 = arith.index_cast %c7_i32_104 : i32 to index
    %c0_112 = arith.constant 0 : index
    %c0_113 = arith.constant 0 : index
    %395 = vector.load %arg10[%394, %c0_112, %c0_113] : memref<8x8x32xf32, #tpu.memory_space<vmem>>, vector<1x8x32xf32>
    %396 = vector.shape_cast %395 : vector<1x8x32xf32> to vector<8x32xf32>
    %397 = vector.shape_cast %393 : vector<8x32xf32> to vector<1x8x32xf32>
    tpu.vector_store %arg10[%394, %c0_112, %c0_113], %397 {strides = array<i32>} : memref<8x8x32xf32, #tpu.memory_space<vmem>>, vector<1x8x32xf32>,
    %398 = vector.extract_strided_slice %375 {offsets = [0, 128], sizes = [8, 128], strides = [1, 1]} : vector<8x256xf32> to vector<8x128xf32>
    %cst_114 = arith.constant dense<0.000000e+00> : vector<8x128xf32>
    %399 = tpu.matmul %364, %10, %cst_114 {dimension_numbers = #tpu.dot_dimension_numbers<[1], [0], [0], [1], [0, 0, 1, 1], [], []>} : vector<8x32xf32>, vector<32x128xf32>, vector<8x128xf32> -> vector<8x128xf32>
    %400 = arith.addf %398, %399 : vector<8x128xf32>
    %401 = arith.negf %400 : vector<8x128xf32>
    %402 = math.exp %401 : vector<8x128xf32>
    %cst_115 = arith.constant 1.000000e+00 : f32
    %403 = vector.broadcast %cst_115 : f32 to vector<8x128xf32>
    %404 = arith.addf %403, %402 : vector<8x128xf32>
    %405 = arith.divf %403, %404 : vector<8x128xf32>
    %406 = math.tanh %400 : vector<8x128xf32>
    %407 = vector.extract_strided_slice %405 {offsets = [0, 0], sizes = [8, 32], strides = [1, 1]} : vector<8x128xf32> to vector<8x32xf32>
    %408 = vector.extract_strided_slice %405 {offsets = [0, 32], sizes = [8, 32], strides = [1, 1]} : vector<8x128xf32> to vector<8x32xf32>
    %409 = vector.extract_strided_slice %406 {offsets = [0, 64], sizes = [8, 32], strides = [1, 1]} : vector<8x128xf32> to vector<8x32xf32>
    %410 = vector.extract_strided_slice %405 {offsets = [0, 96], sizes = [8, 32], strides = [1, 1]} : vector<8x128xf32> to vector<8x32xf32>
    %411 = arith.mulf %408, %362 : vector<8x32xf32>
    %412 = arith.mulf %407, %409 : vector<8x32xf32>
    %413 = arith.addf %411, %412 : vector<8x32xf32>
    %414 = math.tanh %413 : vector<8x32xf32>
    %415 = arith.mulf %410, %414 : vector<8x32xf32>
    %416 = arith.index_cast %369 : i32 to index
    %c0_116 = arith.constant 0 : index
    %c0_117 = arith.constant 0 : index
    %417 = vector.load %arg11[%416, %c0_116, %c0_117] : memref<8x8x32xf32, #tpu.memory_space<vmem>>, vector<1x8x32xf32>
    %418 = vector.shape_cast %417 : vector<1x8x32xf32> to vector<8x32xf32>
    %419 = vector.shape_cast %415 : vector<8x32xf32> to vector<1x8x32xf32>
    tpu.vector_store %arg11[%416, %c0_116, %c0_117], %419 {strides = array<i32>} : memref<8x8x32xf32, #tpu.memory_space<vmem>>, vector<1x8x32xf32>,
    %c8_i32 = arith.constant 8 : i32
    %c0_118 = arith.constant 0 : index
    %c0_119 = arith.constant 0 : index
    %c0_120 = arith.constant 0 : index
    %420 = vector.load %arg10[%c0_118, %c0_119, %c0_120] : memref<8x8x32xf32, #tpu.memory_space<vmem>>, vector<8x8x32xf32>
    %421 = vector.shape_cast %420 : vector<8x8x32xf32> to vector<64x32xf32>
    %c0_121 = arith.constant 0 : index
    %c0_122 = arith.constant 0 : index
    %c0_123 = arith.constant 0 : index
    %422 = vector.load %arg11[%c0_121, %c0_122, %c0_123] : memref<8x8x32xf32, #tpu.memory_space<vmem>>, vector<8x8x32xf32>
    %423 = vector.shape_cast %422 : vector<8x8x32xf32> to vector<64x32xf32>
    %c0_124 = arith.constant 0 : index
    %c0_125 = arith.constant 0 : index
    %424 = vector.load %arg5[%c0_124, %c0_125] : memref<32x128xf32, #tpu.memory_space<vmem>>, vector<32x128xf32>
    %cst_126 = arith.constant dense<0.000000e+00> : vector<64x128xf32>
    %425 = tpu.matmul %421, %424, %cst_126 {dimension_numbers = #tpu.dot_dimension_numbers<[1], [0], [0], [1], [0, 0, 1, 1], [], []>} : vector<64x32xf32>, vector<32x128xf32>, vector<64x128xf32> -> vector<64x128xf32>
    %c0_127 = arith.constant 0 : index
    %c0_128 = arith.constant 0 : index
    %426 = vector.load %arg6[%c0_127, %c0_128] : memref<32x128xf32, #tpu.memory_space<vmem>>, vector<32x128xf32>
    %cst_129 = arith.constant dense<0.000000e+00> : vector<64x128xf32>
    %427 = tpu.matmul %423, %426, %cst_129 {dimension_numbers = #tpu.dot_dimension_numbers<[1], [0], [0], [1], [0, 0, 1, 1], [], []>} : vector<64x32xf32>, vector<32x128xf32>, vector<64x128xf32> -> vector<64x128xf32>
    %428 = arith.addf %425, %427 : vector<64x128xf32>
    %c0_130 = arith.constant 0 : index
    %c0_131 = arith.constant 0 : index
    %429 = vector.load %arg7[%c0_130, %c0_131] : memref<1x128xf32, #tpu.memory_space<vmem>>, vector<1x128xf32>
    %430 = vector.broadcast %429 : vector<1x128xf32> to vector<64x128xf32>
    %431 = arith.addf %428, %430 : vector<64x128xf32>
    %432 = vector.shape_cast %431 : vector<64x128xf32> to vector<8x8x128xf32>
    %c0_132 = arith.constant 0 : index
    %c0_133 = arith.constant 0 : index
    %c0_134 = arith.constant 0 : index
    %433 = vector.load %arg8[%c0_132, %c0_133, %c0_134] : memref<8x8x128xf32, #tpu.memory_space<vmem>>, vector<8x8x128xf32>
    tpu.vector_store %arg8[%c0_132, %c0_133, %c0_134], %432 {strides = array<i32>} : memref<8x8x128xf32, #tpu.memory_space<vmem>>, vector<8x8x128xf32>,
    return
  }
}

</mosaic_0001>

<llo_original>
// kernel: ner_forward.1
$region0: #{ner_forward.1}
  #allocation0 [shape = 'u32[]', space=smem, size = 0x4, offset = 0x4, fixed_abs, tag = 'smem constant byte address 0x4 - core index']
  #allocation1 [shape = 'u32[72,128]{1,0:T(1,128)}', space=vmem, size = 0x9000, scoped, tag = 'internal scratch']
  #allocation2 [shape = 'f32[8,8,256]{2,1,0:T(8,128)}', space=vmem, size = 0x10000, scoped, tag = 'scratch operand']
  #allocation3 [shape = 'f32[8,8,32]{2,1,0:T(8,128)}', space=vmem, size = 0x8000, scoped, tag = 'scratch operand']
  #allocation4 [shape = 'f32[8,8,32]{2,1,0:T(8,128)}', space=vmem, size = 0x8000, scoped, tag = 'scratch operand']
  %s0 = inlined_call_operand.vmem [shape: f32[8,8,32], index: 0, kind: input, shape index: {}]
  %s1 = inlined_call_operand.vmem [shape: f32[32,256], index: 1, kind: input, shape index: {}]
  %s2 = inlined_call_operand.vmem [shape: f32[1,256], index: 2, kind: input, shape index: {}]
  %s3 = inlined_call_operand.vmem [shape: f32[32,128], index: 3, kind: input, shape index: {}]
  %s4 = inlined_call_operand.vmem [shape: f32[32,128], index: 4, kind: input, shape index: {}]
  %s5 = inlined_call_operand.vmem [shape: f32[32,128], index: 5, kind: input, shape index: {}]
  %s6 = inlined_call_operand.vmem [shape: f32[32,128], index: 6, kind: input, shape index: {}]
  %s7 = inlined_call_operand.vmem [shape: f32[1,128], index: 7, kind: input, shape index: {}]
  %s8 = inlined_call_operand.vmem [shape: f32[8,8,128], index: 8, kind: output, shape index: {}]
  %s9 = sld [smem:[#allocation0]]
  $region42: #{ner_forward.1} parent=0
    _
  %s11 = ssub.s32 1, %s9
  %s12 = scalar_select 0, %s11, %s9
  // Predicated region
  $region2: #{ner_forward.1} parent=0 // pred_check
    _
  $region3: #{ner_forward.1} parent=0 // pred_check_branch
    %14 = sbr.rel (0) target = $region5
  $region4: #{ner_forward.1} parent=0 // pred_region
    _
  $region5: #{ner_forward.1} parent=0 // pred_fallthru
    _
  // Predicated region
  $region6: #{ner_forward.1} parent=0 // pred_check
    _
  $region7: #{ner_forward.1} parent=0 // pred_check_branch
    %16 = sbr.rel (0) target = $region9
  $region8: #{ner_forward.1} parent=0 // pred_region
    _
  $region9: #{ner_forward.1} parent=0 // pred_fallthru
    _
  // Predicated region
  $region10: #{ner_forward.1} parent=0 // pred_check
    _
  $region11: #{ner_forward.1} parent=0 // pred_check_branch
    %18 = sbr.rel (0) target = $region13
  $region12: #{ner_forward.1} parent=0 // pred_region
    _
  $region13: #{ner_forward.1} parent=0 // pred_fallthru
    _
  // Predicated region
  $region14: #{ner_forward.1} parent=0 // pred_check
    _
  $region15: #{ner_forward.1} parent=0 // pred_check_branch
    %20 = sbr.rel (0) target = $region17
  $region16: #{ner_forward.1} parent=0 // pred_region
    _
  $region17: #{ner_forward.1} parent=0 // pred_fallthru
    _
  // Predicated region
  $region18: #{ner_forward.1} parent=0 // pred_check
    _
  $region19: #{ner_forward.1} parent=0 // pred_check_branch
    %22 = sbr.rel (0) target = $region21
  $region20: #{ner_forward.1} parent=0 // pred_region
    _
  $region21: #{ner_forward.1} parent=0 // pred_fallthru
    _
  // Predicated region
  $region22: #{ner_forward.1} parent=0 // pred_check
    _
  $region23: #{ner_forward.1} parent=0 // pred_check_branch
    %24 = sbr.rel (0) target = $region25
  $region24: #{ner_forward.1} parent=0 // pred_region
    _
  $region25: #{ner_forward.1} parent=0 // pred_fallthru
    _
  // Predicated region
  $region26: #{ner_forward.1} parent=0 // pred_check
    _
  $region27: #{ner_forward.1} parent=0 // pred_check_branch
    %26 = sbr.rel (0) target = $region29
  $region28: #{ner_forward.1} parent=0 // pred_region
    _
  $region29: #{ner_forward.1} parent=0 // pred_fallthru
    _
  // Predicated region
  $region30: #{ner_forward.1} parent=0 // pred_check
    _
  $region31: #{ner_forward.1} parent=0 // pred_check_branch
    %28 = sbr.rel (0) target = $region33
  $region32: #{ner_forward.1} parent=0 // pred_region
    _
  $region33: #{ner_forward.1} parent=0 // pred_fallthru
    _
  %v29 = vld [vmem:[%s0] sm:$0xff]
  %v30 = vld [vmem:[%s0 + $0x8] sm:$0xff]
  %v31 = vld [vmem:[%s0 + $0x10] sm:$0xff]
  %v32 = vld [vmem:[%s0 + $0x18] sm:$0xff]
  %v33 = vld [vmem:[%s0 + $0x20] sm:$0xff]
  %v34 = vld [vmem:[%s0 + $0x28] sm:$0xff]
  %v35 = vld [vmem:[%s0 + $0x30] sm:$0xff]
  %v36 = vld [vmem:[%s0 + $0x38] sm:$0xff]
  %v37 = vld [vmem:[%s1] sm:$0xff]
  %v38 = vld [vmem:[%s1 + $0x8] sm:$0xff]
  %v39 = vld [vmem:[%s1 + $0x10] sm:$0xff]
  %v40 = vld [vmem:[%s1 + $0x18] sm:$0xff]
  %v41 = vld [vmem:[%s1 + $0x20] sm:$0xff]
  %v42 = vld [vmem:[%s1 + $0x28] sm:$0xff]
  %v43 = vld [vmem:[%s1 + $0x30] sm:$0xff]
  %v44 = vld [vmem:[%s1 + $0x38] sm:$0xff]
  %v45 = vld [vmem:[%s2] sm:$0x3]
  %v47 = vperm.slane %v45, 0
  %v48 = vperm.slane %v45, 1
  %vm51 = vcmask 261120
  %v53 = vsel %vm51, %v29, 0
  %v56 = vsel %vm51, %v30, 0
  %v59 = vsel %vm51, %v31, 0
  %v62 = vsel %vm51, %v32, 0
  %v65 = vsel %vm51, %v33, 0
  %v68 = vsel %vm51, %v34, 0
  %v71 = vsel %vm51, %v35, 0
  %v74 = vsel %vm51, %v36, 0
  %76 = vmatpush.msra.mxu0 0.0
  %77 = vmatpush.msra.mxu0 0.0
  %78 = vmatpush.msra.mxu0 0.0
  %79 = vmatpush.msra.mxu0 0.0
  %80 = vmatpush.msra.mxu0 0.0
  %81 = vmatpush.msra.mxu0 0.0
  %82 = vmatpush.msra.mxu0 0.0
  %83 = vmatpush.msra.mxu0 0.0
  %84 = vmatpush.msra.mxu0 0.0
  %85 = vmatpush.msra.mxu0 0.0
  %86 = vmatpush.msra.mxu0 0.0
  %87 = vmatpush.msra.mxu0 0.0
  %88 = vmatpush.msra.mxu0 %v43
  %89 = vmatpush.msra.mxu0 %v41
  %90 = vmatpush.msra.mxu0 %v39
  %91 = vmatpush.msra.mxu0 %v37
  %92 = vmatmul.f32.gmra.mxu0 %v53
  %v93 = vpop.f32.mrf.mxu0
  %v94 = vadd.f32 %v47, %v93
  %95 = vmatmul.f32.gmra.mxu0 %v56
  %v96 = vpop.f32.mrf.mxu0
  %v97 = vadd.f32 %v47, %v96
  %98 = vmatmul.f32.gmra.mxu0 %v59
  %v99 = vpop.f32.mrf.mxu0
  %v100 = vadd.f32 %v47, %v99
  %101 = vmatmul.f32.gmra.mxu0 %v62
  %v102 = vpop.f32.mrf.mxu0
  %v103 = vadd.f32 %v47, %v102
  %104 = vmatmul.f32.gmra.mxu0 %v65
  %v105 = vpop.f32.mrf.mxu0
  %v106 = vadd.f32 %v47, %v105
  %107 = vmatmul.f32.gmra.mxu0 %v68
  %v108 = vpop.f32.mrf.mxu0
  %v109 = vadd.f32 %v47, %v108
  %110 = vmatmul.f32.gmra.mxu0 %v71
  %v111 = vpop.f32.mrf.mxu0
  %v112 = vadd.f32 %v47, %v111
  %113 = vmatmul.f32.gmra.mxu0 %v74
  %v114 = vpop.f32.mrf.mxu0
  %v115 = vadd.f32 %v47, %v114
  %116 = vdwg.mxu0
  %117 = vmatpush.msra.mxu0 0.0
  %118 = vmatpush.msra.mxu0 0.0
  %119 = vmatpush.msra.mxu0 0.0
  %120 = vmatpush.msra.mxu0 0.0
  %121 = vmatpush.msra.mxu0 0.0
  %122 = vmatpush.msra.mxu0 0.0
  %123 = vmatpush.msra.mxu0 0.0
  %124 = vmatpush.msra.mxu0 0.0
  %125 = vmatpush.msra.mxu0 0.0
  %126 = vmatpush.msra.mxu0 0.0
  %127 = vmatpush.msra.mxu0 0.0
  %128 = vmatpush.msra.mxu0 0.0
  %129 = vmatpush.msra.mxu0 %v44
  %130 = vmatpush.msra.mxu0 %v42
  %131 = vmatpush.msra.mxu0 %v40
  %132 = vmatpush.msra.mxu0 %v38
  %133 = vmatmul.f32.gmra.mxu0 %v53
  %v134 = vpop.f32.mrf.mxu0
  %v135 = vadd.f32 %v48, %v134
  %136 = vmatmul.f32.gmra.mxu0 %v56
  %v137 = vpop.f32.mrf.mxu0
  %v138 = vadd.f32 %v48, %v137
  %139 = vmatmul.f32.gmra.mxu0 %v59
  %v140 = vpop.f32.mrf.mxu0
  %v141 = vadd.f32 %v48, %v140
  %142 = vmatmul.f32.gmra.mxu0 %v62
  %v143 = vpop.f32.mrf.mxu0
  %v144 = vadd.f32 %v48, %v143
  %145 = vmatmul.f32.gmra.mxu0 %v65
  %v146 = vpop.f32.mrf.mxu0
  %v147 = vadd.f32 %v48, %v146
  %148 = vmatmul.f32.gmra.mxu0 %v68
  %v149 = vpop.f32.mrf.mxu0
  %v150 = vadd.f32 %v48, %v149
  %151 = vmatmul.f32.gmra.mxu0 %v71
  %v152 = vpop.f32.mrf.mxu0
  %v153 = vadd.f32 %v48, %v152
  %154 = vmatmul.f32.gmra.mxu0 %v74
  %v155 = vpop.f32.mrf.mxu0
  %v156 = vadd.f32 %v48, %v155
  %157 = vdwg.mxu0
  %158 = vst [vmem:[#allocation2] sm:$0xff] %v94
  %159 = vst [vmem:[#allocation2 + $0x8] sm:$0xff] %v135
  %160 = vst [vmem:[#allocation2 + $0x10] sm:$0xff] %v97
  %161 = vst [vmem:[#allocation2 + $0x18] sm:$0xff] %v138
  %162 = vst [vmem:[#allocation2 + $0x20] sm:$0xff] %v100
  %163 = vst [vmem:[#allocation2 + $0x28] sm:$0xff] %v141
  %164 = vst [vmem:[#allocation2 + $0x30] sm:$0xff] %v103
  %165 = vst [vmem:[#allocation2 + $0x38] sm:$0xff] %v144
  %166 = vst [vmem:[#allocation2 + $0x40] sm:$0xff] %v106
  %167 = vst [vmem:[#allocation2 + $0x48] sm:$0xff] %v147
  %168 = vst [vmem:[#allocation2 + $0x50] sm:$0xff] %v109
  %169 = vst [vmem:[#allocation2 + $0x58] sm:$0xff] %v150
  %170 = vst [vmem:[#allocation2 + $0x60] sm:$0xff] %v112
  %171 = vst [vmem:[#allocation2 + $0x68] sm:$0xff] %v153
  %172 = vst [vmem:[#allocation2 + $0x70] sm:$0xff] %v115
  %173 = vst [vmem:[#allocation2 + $0x78] sm:$0xff] %v156
  %v174 = vld [vmem:[%s3] sm:$0xff]
  %v175 = vld [vmem:[%s3 + $0x8] sm:$0xff]
  %v176 = vld [vmem:[%s3 + $0x10] sm:$0xff]
  %v177 = vld [vmem:[%s3 + $0x18] sm:$0xff]
  %v178 = vld [vmem:[%s4] sm:$0xff]
  %v179 = vld [vmem:[%s4 + $0x8] sm:$0xff]
  %v180 = vld [vmem:[%s4 + $0x10] sm:$0xff]
  %v181 = vld [vmem:[%s4 + $0x18] sm:$0xff]
  %v182 = vld [vmem:[#allocation2] sm:$0xff]
  %s183 = scalar_lea.vmem [#allocation2], 112
  %v184 = vld [vmem:[%s183 + $0x8] sm:$0xff]
  %v186 = vsel %vm51, 0.0, 0
  %188 = vmatpush.msra.mxu0 0.0
  %189 = vmatpush.msra.mxu0 0.0
  %190 = vmatpush.msra.mxu0 0.0
  %191 = vmatpush.msra.mxu0 0.0
  %192 = vmatpush.msra.mxu0 0.0
  %193 = vmatpush.msra.mxu0 0.0
  %194 = vmatpush.msra.mxu0 0.0
  %195 = vmatpush.msra.mxu0 0.0
  %196 = vmatpush.msra.mxu0 0.0
  %197 = vmatpush.msra.mxu0 0.0
  %198 = vmatpush.msra.mxu0 0.0
  %199 = vmatpush.msra.mxu0 0.0
  %200 = vmatpush.msra.mxu0 %v177
  %201 = vmatpush.msra.mxu0 %v176
  %202 = vmatpush.msra.mxu0 %v175
  %203 = vmatpush.msra.mxu0 %v174
  %204 = vmatmul.f32.gmra.mxu0 %v186
  %v205 = vpop.f32.mrf.mxu0
  %v206 = vadd.f32 0.0, %v205
  %207 = vdwg.mxu0
  %v208 = vadd.f32 %v182, %v206
  %v209 = vxor.u32 %v208, 2147483648
  %v210 = vmul.f32 %v209, 1.442695
  %v211 = vpow.pop %v210
  %v212 = vadd.f32 %v211, 1.0
  %v213 = vrcp.pop %v212
  %v214 = vmul.f32 %v212, %v213
  %v215 = vsub.f32 1.0, %v214
  %v216 = vmul.f32 %v213, %v215
  %v217 = vadd.f32 %v213, %v216
  %vm218 = vweird.f32 %v212
  %vm219 = vweird.f32 %v213
  %vm220 = vmor %vm218, %vm219
  %v221 = vsel %vm220, %v213, %v217
  %v222 = vand.u32 2147483647, %v212
  %vm223 = vcmp.eq.f32.partialorder %v222, 8.507059e+37
  %v224 = vand.u32 %v212, 2147483648
  %v225 = vor.u32 1.1754944e-38, %v224
  %v226 = vsel %vm223, %v225, %v221
  %v227 = vmul.f32 1.0, %v226
  %v228 = vtanh.pop %v208
  %v229 = vmul.f32 %v227, 0.0
  %231 = vrot.lane.b32.xlu0 %v228, 64
  %v232 = vpop.permute.xlu0 %231
  %v234 = vmul.f32 %v227, %v232
  %236 = vrot.lane.b32.xlu0 %v234, 32
  %v237 = vpop.permute.xlu0 %236
  %v239 = vadd.f32 %v229, %v237
  %v240 = vtanh.pop %v239
  %242 = vrot.lane.b32.xlu0 %v240, 64
  %v243 = vpop.permute.xlu0 %242
  %v245 = vmul.f32 %v227, %v243
  %247 = vrot.lane.b32.xlu0 %v245, 32
  %v248 = vpop.permute.xlu0 %247
  %250 = vst.msk [vmem:[#allocation3] sm:$0xff] %vm51, %v248
  %251 = vmatpush.msra.mxu0 0.0
  %252 = vmatpush.msra.mxu0 0.0
  %253 = vmatpush.msra.mxu0 0.0
  %254 = vmatpush.msra.mxu0 0.0
  %255 = vmatpush.msra.mxu0 0.0
  %256 = vmatpush.msra.mxu0 0.0
  %257 = vmatpush.msra.mxu0 0.0
  %258 = vmatpush.msra.mxu0 0.0
  %259 = vmatpush.msra.mxu0 0.0
  %260 = vmatpush.msra.mxu0 0.0
  %261 = vmatpush.msra.mxu0 0.0
  %262 = vmatpush.msra.mxu0 0.0
  %263 = vmatpush.msra.mxu0 %v181
  %264 = vmatpush.msra.mxu0 %v180
  %265 = vmatpush.msra.mxu0 %v179
  %266 = vmatpush.msra.mxu0 %v178
  %267 = vmatmul.f32.gmra.mxu0 %v186
  %v268 = vpop.f32.mrf.mxu0
  %v269 = vadd.f32 0.0, %v268
  %270 = vdwg.mxu0
  %v271 = vadd.f32 %v184, %v269
  %v272 = vxor.u32 %v271, 2147483648
  %v273 = vmul.f32 %v272, 1.442695
  %v274 = vpow.pop %v273
  %v275 = vadd.f32 %v274, 1.0
  %v276 = vrcp.pop %v275
  %v277 = vmul.f32 %v275, %v276
  %v278 = vsub.f32 1.0, %v277
  %v279 = vmul.f32 %v276, %v278
  %v280 = vadd.f32 %v276, %v279
  %vm281 = vweird.f32 %v275
  %vm282 = vweird.f32 %v276
  %vm283 = vmor %vm281, %vm282
  %v284 = vsel %vm283, %v276, %v280
  %v285 = vand.u32 2147483647, %v275
  %vm286 = vcmp.eq.f32.partialorder %v285, 8.507059e+37
  %v287 = vand.u32 %v275, 2147483648
  %v288 = vor.u32 1.1754944e-38, %v287
  %v289 = vsel %vm286, %v288, %v284
  %v290 = vmul.f32 1.0, %v289
  %v291 = vtanh.pop %v271
  %v292 = vmul.f32 %v290, 0.0
  %294 = vrot.lane.b32.xlu0 %v291, 64
  %v295 = vpop.permute.xlu0 %294
  %v297 = vmul.f32 %v290, %v295
  %299 = vrot.lane.b32.xlu0 %v297, 32
  %v300 = vpop.permute.xlu0 %299
  %v302 = vadd.f32 %v292, %v300
  %v303 = vtanh.pop %v302
  %305 = vrot.lane.b32.xlu0 %v303, 64
  %v306 = vpop.permute.xlu0 %305
  %v308 = vmul.f32 %v290, %v306
  %310 = vrot.lane.b32.xlu0 %v308, 32
  %v311 = vpop.permute.xlu0 %310
  %s313 = scalar_lea.vmem [#allocation4], 56
  %314 = vst.msk [vmem:[%s313] sm:$0xff] %vm51, %v311
  %s315 = scalar_lea.vmem [#allocation2], 16
  %v316 = vld [vmem:[%s315] sm:$0xff]
  %s317 = scalar_lea.vmem [#allocation2], 96
  %v318 = vld [vmem:[%s317 + $0x8] sm:$0xff]
  %v319 = vsel %vm51, %v248, 0
  %321 = vmatpush.msra.mxu0 0.0
  %322 = vmatpush.msra.mxu0 0.0
  %323 = vmatpush.msra.mxu0 0.0
  %324 = vmatpush.msra.mxu0 0.0
  %325 = vmatpush.msra.mxu0 0.0
  %326 = vmatpush.msra.mxu0 0.0
  %327 = vmatpush.msra.mxu0 0.0
  %328 = vmatpush.msra.mxu0 0.0
  %329 = vmatpush.msra.mxu0 0.0
  %330 = vmatpush.msra.mxu0 0.0
  %331 = vmatpush.msra.mxu0 0.0
  %332 = vmatpush.msra.mxu0 0.0
  %333 = vmatpush.msra.mxu0 %v177
  %334 = vmatpush.msra.mxu0 %v176
  %335 = vmatpush.msra.mxu0 %v175
  %336 = vmatpush.msra.mxu0 %v174
  %337 = vmatmul.f32.gmra.mxu0 %v319
  %v338 = vpop.f32.mrf.mxu0
  %v339 = vadd.f32 0.0, %v338
  %340 = vdwg.mxu0
  %v341 = vadd.f32 %v316, %v339
  %v342 = vxor.u32 %v341, 2147483648
  %v343 = vmul.f32 %v342, 1.442695
  %v344 = vpow.pop %v343
  %v345 = vadd.f32 %v344, 1.0
  %v346 = vrcp.pop %v345
  %v347 = vmul.f32 %v345, %v346
  %v348 = vsub.f32 1.0, %v347
  %v349 = vmul.f32 %v346, %v348
  %v350 = vadd.f32 %v346, %v349
  %vm351 = vweird.f32 %v345
  %vm352 = vweird.f32 %v346
  %vm353 = vmor %vm351, %vm352
  %v354 = vsel %vm353, %v346, %v350
  %v355 = vand.u32 2147483647, %v345
  %vm356 = vcmp.eq.f32.partialorder %v355, 8.507059e+37
  %v357 = vand.u32 %v345, 2147483648
  %v358 = vor.u32 1.1754944e-38, %v357
  %v359 = vsel %vm356, %v358, %v354
  %v360 = vmul.f32 1.0, %v359
  %v361 = vtanh.pop %v341
  %v362 = vmul.f32 %v360, %v239
  %364 = vrot.lane.b32.xlu0 %v361, 64
  %v365 = vpop.permute.xlu0 %364
  %v367 = vmul.f32 %v360, %v365
  %369 = vrot.lane.b32.xlu0 %v367, 32
  %v370 = vpop.permute.xlu0 %369
  %v372 = vadd.f32 %v362, %v370
  %v373 = vtanh.pop %v372
  %375 = vrot.lane.b32.xlu0 %v373, 64
  %v376 = vpop.permute.xlu0 %375
  %v378 = vmul.f32 %v360, %v376
  %380 = vrot.lane.b32.xlu0 %v378, 32
  %v381 = vpop.permute.xlu0 %380
  %s383 = scalar_lea.vmem [#allocation3], 8
  %384 = vst.msk [vmem:[%s383] sm:$0xff] %vm51, %v381
  %v385 = vsel %vm51, %v311, 0
  %387 = vmatpush.msra.mxu0 0.0
  %388 = vmatpush.msra.mxu0 0.0
  %389 = vmatpush.msra.mxu0 0.0
  %390 = vmatpush.msra.mxu0 0.0
  %391 = vmatpush.msra.mxu0 0.0
  %392 = vmatpush.msra.mxu0 0.0
  %393 = vmatpush.msra.mxu0 0.0
  %394 = vmatpush.msra.mxu0 0.0
  %395 = vmatpush.msra.mxu0 0.0
  %396 = vmatpush.msra.mxu0 0.0
  %397 = vmatpush.msra.mxu0 0.0
  %398 = vmatpush.msra.mxu0 0.0
  %399 = vmatpush.msra.mxu0 %v181
  %400 = vmatpush.msra.mxu0 %v180
  %401 = vmatpush.msra.mxu0 %v179
  %402 = vmatpush.msra.mxu0 %v178
  %403 = vmatmul.f32.gmra.mxu0 %v385
  %v404 = vpop.f32.mrf.mxu0
  %v405 = vadd.f32 0.0, %v404
  %406 = vdwg.mxu0
  %v407 = vadd.f32 %v318, %v405
  %v408 = vxor.u32 %v407, 2147483648
  %v409 = vmul.f32 %v408, 1.442695
  %v410 = vpow.pop %v409
  %v411 = vadd.f32 %v410, 1.0
  %v412 = vrcp.pop %v411
  %v413 = vmul.f32 %v411, %v412
  %v414 = vsub.f32 1.0, %v413
  %v415 = vmul.f32 %v412, %v414
  %v416 = vadd.f32 %v412, %v415
  %vm417 = vweird.f32 %v411
  %vm418 = vweird.f32 %v412
  %vm419 = vmor %vm417, %vm418
  %v420 = vsel %vm419, %v412, %v416
  %v421 = vand.u32 2147483647, %v411
  %vm422 = vcmp.eq.f32.partialorder %v421, 8.507059e+37
  %v423 = vand.u32 %v411, 2147483648
  %v424 = vor.u32 1.1754944e-38, %v423
  %v425 = vsel %vm422, %v424, %v420
  %v426 = vmul.f32 1.0, %v425
  %v427 = vtanh.pop %v407
  %v428 = vmul.f32 %v426, %v302
  %430 = vrot.lane.b32.xlu0 %v427, 64
  %v431 = vpop.permute.xlu0 %430
  %v433 = vmul.f32 %v426, %v431
  %435 = vrot.lane.b32.xlu0 %v433, 32
  %v436 = vpop.permute.xlu0 %435
  %v438 = vadd.f32 %v428, %v436
  %v439 = vtanh.pop %v438
  %441 = vrot.lane.b32.xlu0 %v439, 64
  %v442 = vpop.permute.xlu0 %441
  %v444 = vmul.f32 %v426, %v442
  %446 = vrot.lane.b32.xlu0 %v444, 32
  %v447 = vpop.permute.xlu0 %446
  %s449 = scalar_lea.vmem [#allocation4], 48
  %450 = vst.msk [vmem:[%s449] sm:$0xff] %vm51, %v447
  %s451 = scalar_lea.vmem [#allocation2], 32
  %v452 = vld [vmem:[%s451] sm:$0xff]
  %s453 = scalar_lea.vmem [#allocation2], 80
  %v454 = vld [vmem:[%s453 + $0x8] sm:$0xff]
  %v455 = vsel %vm51, %v381, 0
  %457 = vmatpush.msra.mxu0 0.0
  %458 = vmatpush.msra.mxu0 0.0
  %459 = vmatpush.msra.mxu0 0.0
  %460 = vmatpush.msra.mxu0 0.0
  %461 = vmatpush.msra.mxu0 0.0
  %462 = vmatpush.msra.mxu0 0.0
  %463 = vmatpush.msra.mxu0 0.0
  %464 = vmatpush.msra.mxu0 0.0
  %465 = vmatpush.msra.mxu0 0.0
  %466 = vmatpush.msra.mxu0 0.0
  %467 = vmatpush.msra.mxu0 0.0
  %468 = vmatpush.msra.mxu0 0.0
  %469 = vmatpush.msra.mxu0 %v177
  %470 = vmatpush.msra.mxu0 %v176
  %471 = vmatpush.msra.mxu0 %v175
  %472 = vmatpush.msra.mxu0 %v174
  %473 = vmatmul.f32.gmra.mxu0 %v455
  %v474 = vpop.f32.mrf.mxu0
  %v475 = vadd.f32 0.0, %v474
  %476 = vdwg.mxu0
  %v477 = vadd.f32 %v452, %v475
  %v478 = vxor.u32 %v477, 2147483648
  %v479 = vmul.f32 %v478, 1.442695
  %v480 = vpow.pop %v479
  %v481 = vadd.f32 %v480, 1.0
  %v482 = vrcp.pop %v481
  %v483 = vmul.f32 %v481, %v482
  %v484 = vsub.f32 1.0, %v483
  %v485 = vmul.f32 %v482, %v484
  %v486 = vadd.f32 %v482, %v485
  %vm487 = vweird.f32 %v481
  %vm488 = vweird.f32 %v482
  %vm489 = vmor %vm487, %vm488
  %v490 = vsel %vm489, %v482, %v486
  %v491 = vand.u32 2147483647, %v481
  %vm492 = vcmp.eq.f32.partialorder %v491, 8.507059e+37
  %v493 = vand.u32 %v481, 2147483648
  %v494 = vor.u32 1.1754944e-38, %v493
  %v495 = vsel %vm492, %v494, %v490
  %v496 = vmul.f32 1.0, %v495
  %v497 = vtanh.pop %v477
  %v498 = vmul.f32 %v496, %v372
  %500 = vrot.lane.b32.xlu0 %v497, 64
  %v501 = vpop.permute.xlu0 %500
  %v503 = vmul.f32 %v496, %v501
  %505 = vrot.lane.b32.xlu0 %v503, 32
  %v506 = vpop.permute.xlu0 %505
  %v508 = vadd.f32 %v498, %v506
  %v509 = vtanh.pop %v508
  %511 = vrot.lane.b32.xlu0 %v509, 64
  %v512 = vpop.permute.xlu0 %511
  %v514 = vmul.f32 %v496, %v512
  %516 = vrot.lane.b32.xlu0 %v514, 32
  %v517 = vpop.permute.xlu0 %516
  %s519 = scalar_lea.vmem [#allocation3], 16
  %520 = vst.msk [vmem:[%s519] sm:$0xff] %vm51, %v517
  %v521 = vsel %vm51, %v447, 0
  %523 = vmatpush.msra.mxu0 0.0
  %524 = vmatpush.msra.mxu0 0.0
  %525 = vmatpush.msra.mxu0 0.0
  %526 = vmatpush.msra.mxu0 0.0
  %527 = vmatpush.msra.mxu0 0.0
  %528 = vmatpush.msra.mxu0 0.0
  %529 = vmatpush.msra.mxu0 0.0
  %530 = vmatpush.msra.mxu0 0.0
  %531 = vmatpush.msra.mxu0 0.0
  %532 = vmatpush.msra.mxu0 0.0
  %533 = vmatpush.msra.mxu0 0.0
  %534 = vmatpush.msra.mxu0 0.0
  %535 = vmatpush.msra.mxu0 %v181
  %536 = vmatpush.msra.mxu0 %v180
  %537 = vmatpush.msra.mxu0 %v179
  %538 = vmatpush.msra.mxu0 %v178
  %539 = vmatmul.f32.gmra.mxu0 %v521
  %v540 = vpop.f32.mrf.mxu0
  %v541 = vadd.f32 0.0, %v540
  %542 = vdwg.mxu0
  %v543 = vadd.f32 %v454, %v541
  %v544 = vxor.u32 %v543, 2147483648
  %v545 = vmul.f32 %v544, 1.442695
  %v546 = vpow.pop %v545
  %v547 = vadd.f32 %v546, 1.0
  %v548 = vrcp.pop %v547
  %v549 = vmul.f32 %v547, %v548
  %v550 = vsub.f32 1.0, %v549
  %v551 = vmul.f32 %v548, %v550
  %v552 = vadd.f32 %v548, %v551
  %vm553 = vweird.f32 %v547
  %vm554 = vweird.f32 %v548
  %vm555 = vmor %vm553, %vm554
  %v556 = vsel %vm555, %v548, %v552
  %v557 = vand.u32 2147483647, %v547
  %vm558 = vcmp.eq.f32.partialorder %v557, 8.507059e+37
  %v559 = vand.u32 %v547, 2147483648
  %v560 = vor.u32 1.1754944e-38, %v559
  %v561 = vsel %vm558, %v560, %v556
  %v562 = vmul.f32 1.0, %v561
  %v563 = vtanh.pop %v543
  %v564 = vmul.f32 %v562, %v438
  %566 = vrot.lane.b32.xlu0 %v563, 64
  %v567 = vpop.permute.xlu0 %566
  %v569 = vmul.f32 %v562, %v567
  %571 = vrot.lane.b32.xlu0 %v569, 32
  %v572 = vpop.permute.xlu0 %571
  %v574 = vadd.f32 %v564, %v572
  %v575 = vtanh.pop %v574
  %577 = vrot.lane.b32.xlu0 %v575, 64
  %v578 = vpop.permute.xlu0 %577
  %v580 = vmul.f32 %v562, %v578
  %582 = vrot.lane.b32.xlu0 %v580, 32
  %v583 = vpop.permute.xlu0 %582
  %s585 = scalar_lea.vmem [#allocation4], 40
  %586 = vst.msk [vmem:[%s585] sm:$0xff] %vm51, %v583
  %s587 = scalar_lea.vmem [#allocation2], 48
  %v588 = vld [vmem:[%s587] sm:$0xff]
  %s589 = scalar_lea.vmem [#allocation2], 64
  %v590 = vld [vmem:[%s589 + $0x8] sm:$0xff]
  %v591 = vsel %vm51, %v517, 0
  %593 = vmatpush.msra.mxu0 0.0
  %594 = vmatpush.msra.mxu0 0.0
  %595 = vmatpush.msra.mxu0 0.0
  %596 = vmatpush.msra.mxu0 0.0
  %597 = vmatpush.msra.mxu0 0.0
  %598 = vmatpush.msra.mxu0 0.0
  %599 = vmatpush.msra.mxu0 0.0
  %600 = vmatpush.msra.mxu0 0.0
  %601 = vmatpush.msra.mxu0 0.0
  %602 = vmatpush.msra.mxu0 0.0
  %603 = vmatpush.msra.mxu0 0.0
  %604 = vmatpush.msra.mxu0 0.0
  %605 = vmatpush.msra.mxu0 %v177
  %606 = vmatpush.msra.mxu0 %v176
  %607 = vmatpush.msra.mxu0 %v175
  %608 = vmatpush.msra.mxu0 %v174
  %609 = vmatmul.f32.gmra.mxu0 %v591
  %v610 = vpop.f32.mrf.mxu0
  %v611 = vadd.f32 0.0, %v610
  %612 = vdwg.mxu0
  %v613 = vadd.f32 %v588, %v611
  %v614 = vxor.u32 %v613, 2147483648
  %v615 = vmul.f32 %v614, 1.442695
  %v616 = vpow.pop %v615
  %v617 = vadd.f32 %v616, 1.0
  %v618 = vrcp.pop %v617
  %v619 = vmul.f32 %v617, %v618
  %v620 = vsub.f32 1.0, %v619
  %v621 = vmul.f32 %v618, %v620
  %v622 = vadd.f32 %v618, %v621
  %vm623 = vweird.f32 %v617
  %vm624 = vweird.f32 %v618
  %vm625 = vmor %vm623, %vm624
  %v626 = vsel %vm625, %v618, %v622
  %v627 = vand.u32 2147483647, %v617
  %vm628 = vcmp.eq.f32.partialorder %v627, 8.507059e+37
  %v629 = vand.u32 %v617, 2147483648
  %v630 = vor.u32 1.1754944e-38, %v629
  %v631 = vsel %vm628, %v630, %v626
  %v632 = vmul.f32 1.0, %v631
  %v633 = vtanh.pop %v613
  %v634 = vmul.f32 %v632, %v508
  %636 = vrot.lane.b32.xlu0 %v633, 64
  %v637 = vpop.permute.xlu0 %636
  %v639 = vmul.f32 %v632, %v637
  %641 = vrot.lane.b32.xlu0 %v639, 32
  %v642 = vpop.permute.xlu0 %641
  %v644 = vadd.f32 %v634, %v642
  %v645 = vtanh.pop %v644
  %647 = vrot.lane.b32.xlu0 %v645, 64
  %v648 = vpop.permute.xlu0 %647
  %v650 = vmul.f32 %v632, %v648
  %652 = vrot.lane.b32.xlu0 %v650, 32
  %v653 = vpop.permute.xlu0 %652
  %s655 = scalar_lea.vmem [#allocation3], 24
  %656 = vst.msk [vmem:[%s655] sm:$0xff] %vm51, %v653
  %v657 = vsel %vm51, %v583, 0
  %659 = vmatpush.msra.mxu0 0.0
  %660 = vmatpush.msra.mxu0 0.0
  %661 = vmatpush.msra.mxu0 0.0
  %662 = vmatpush.msra.mxu0 0.0
  %663 = vmatpush.msra.mxu0 0.0
  %664 = vmatpush.msra.mxu0 0.0
  %665 = vmatpush.msra.mxu0 0.0
  %666 = vmatpush.msra.mxu0 0.0
  %667 = vmatpush.msra.mxu0 0.0
  %668 = vmatpush.msra.mxu0 0.0
  %669 = vmatpush.msra.mxu0 0.0
  %670 = vmatpush.msra.mxu0 0.0
  %671 = vmatpush.msra.mxu0 %v181
  %672 = vmatpush.msra.mxu0 %v180
  %673 = vmatpush.msra.mxu0 %v179
  %674 = vmatpush.msra.mxu0 %v178
  %675 = vmatmul.f32.gmra.mxu0 %v657
  %v676 = vpop.f32.mrf.mxu0
  %v677 = vadd.f32 0.0, %v676
  %678 = vdwg.mxu0
  %v679 = vadd.f32 %v590, %v677
  %v680 = vxor.u32 %v679, 2147483648
  %v681 = vmul.f32 %v680, 1.442695
  %v682 = vpow.pop %v681
  %v683 = vadd.f32 %v682, 1.0
  %v684 = vrcp.pop %v683
  %v685 = vmul.f32 %v683, %v684
  %v686 = vsub.f32 1.0, %v685
  %v687 = vmul.f32 %v684, %v686
  %v688 = vadd.f32 %v684, %v687
  %vm689 = vweird.f32 %v683
  %vm690 = vweird.f32 %v684
  %vm691 = vmor %vm689, %vm690
  %v692 = vsel %vm691, %v684, %v688
  %v693 = vand.u32 2147483647, %v683
  %vm694 = vcmp.eq.f32.partialorder %v693, 8.507059e+37
  %v695 = vand.u32 %v683, 2147483648
  %v696 = vor.u32 1.1754944e-38, %v695
  %v697 = vsel %vm694, %v696, %v692
  %v698 = vmul.f32 1.0, %v697
  %v699 = vtanh.pop %v679
  %v700 = vmul.f32 %v698, %v574
  %702 = vrot.lane.b32.xlu0 %v699, 64
  %v703 = vpop.permute.xlu0 %702
  %v705 = vmul.f32 %v698, %v703
  %707 = vrot.lane.b32.xlu0 %v705, 32
  %v708 = vpop.permute.xlu0 %707
  %v710 = vadd.f32 %v700, %v708
  %v711 = vtanh.pop %v710
  %713 = vrot.lane.b32.xlu0 %v711, 64
  %v714 = vpop.permute.xlu0 %713
  %v716 = vmul.f32 %v698, %v714
  %718 = vrot.lane.b32.xlu0 %v716, 32
  %v719 = vpop.permute.xlu0 %718
  %s721 = scalar_lea.vmem [#allocation4], 32
  %722 = vst.msk [vmem:[%s721] sm:$0xff] %vm51, %v719
  %v723 = vld [vmem:[%s589] sm:$0xff]
  %v724 = vld [vmem:[%s587 + $0x8] sm:$0xff]
  %v725 = vsel %vm51, %v653, 0
  %727 = vmatpush.msra.mxu0 0.0
  %728 = vmatpush.msra.mxu0 0.0
  %729 = vmatpush.msra.mxu0 0.0
  %730 = vmatpush.msra.mxu0 0.0
  %731 = vmatpush.msra.mxu0 0.0
  %732 = vmatpush.msra.mxu0 0.0
  %733 = vmatpush.msra.mxu0 0.0
  %734 = vmatpush.msra.mxu0 0.0
  %735 = vmatpush.msra.mxu0 0.0
  %736 = vmatpush.msra.mxu0 0.0
  %737 = vmatpush.msra.mxu0 0.0
  %738 = vmatpush.msra.mxu0 0.0
  %739 = vmatpush.msra.mxu0 %v177
  %740 = vmatpush.msra.mxu0 %v176
  %741 = vmatpush.msra.mxu0 %v175
  %742 = vmatpush.msra.mxu0 %v174
  %743 = vmatmul.f32.gmra.mxu0 %v725
  %v744 = vpop.f32.mrf.mxu0
  %v745 = vadd.f32 0.0, %v744
  %746 = vdwg.mxu0
  %v747 = vadd.f32 %v723, %v745
  %v748 = vxor.u32 %v747, 2147483648
  %v749 = vmul.f32 %v748, 1.442695
  %v750 = vpow.pop %v749
  %v751 = vadd.f32 %v750, 1.0
  %v752 = vrcp.pop %v751
  %v753 = vmul.f32 %v751, %v752
  %v754 = vsub.f32 1.0, %v753
  %v755 = vmul.f32 %v752, %v754
  %v756 = vadd.f32 %v752, %v755
  %vm757 = vweird.f32 %v751
  %vm758 = vweird.f32 %v752
  %vm759 = vmor %vm757, %vm758
  %v760 = vsel %vm759, %v752, %v756
  %v761 = vand.u32 2147483647, %v751
  %vm762 = vcmp.eq.f32.partialorder %v761, 8.507059e+37
  %v763 = vand.u32 %v751, 2147483648
  %v764 = vor.u32 1.1754944e-38, %v763
  %v765 = vsel %vm762, %v764, %v760
  %v766 = vmul.f32 1.0, %v765
  %v767 = vtanh.pop %v747
  %v768 = vmul.f32 %v766, %v644
  %770 = vrot.lane.b32.xlu0 %v767, 64
  %v771 = vpop.permute.xlu0 %770
  %v773 = vmul.f32 %v766, %v771
  %775 = vrot.lane.b32.xlu0 %v773, 32
  %v776 = vpop.permute.xlu0 %775
  %v778 = vadd.f32 %v768, %v776
  %v779 = vtanh.pop %v778
  %781 = vrot.lane.b32.xlu0 %v779, 64
  %v782 = vpop.permute.xlu0 %781
  %v784 = vmul.f32 %v766, %v782
  %786 = vrot.lane.b32.xlu0 %v784, 32
  %v787 = vpop.permute.xlu0 %786
  %s789 = scalar_lea.vmem [#allocation3], 32
  %790 = vst.msk [vmem:[%s789] sm:$0xff] %vm51, %v787
  %v791 = vsel %vm51, %v719, 0
  %793 = vmatpush.msra.mxu0 0.0
  %794 = vmatpush.msra.mxu0 0.0
  %795 = vmatpush.msra.mxu0 0.0
  %796 = vmatpush.msra.mxu0 0.0
  %797 = vmatpush.msra.mxu0 0.0
  %798 = vmatpush.msra.mxu0 0.0
  %799 = vmatpush.msra.mxu0 0.0
  %800 = vmatpush.msra.mxu0 0.0
  %801 = vmatpush.msra.mxu0 0.0
  %802 = vmatpush.msra.mxu0 0.0
  %803 = vmatpush.msra.mxu0 0.0
  %804 = vmatpush.msra.mxu0 0.0
  %805 = vmatpush.msra.mxu0 %v181
  %806 = vmatpush.msra.mxu0 %v180
  %807 = vmatpush.msra.mxu0 %v179
  %808 = vmatpush.msra.mxu0 %v178
  %809 = vmatmul.f32.gmra.mxu0 %v791
  %v810 = vpop.f32.mrf.mxu0
  %v811 = vadd.f32 0.0, %v810
  %812 = vdwg.mxu0
  %v813 = vadd.f32 %v724, %v811
  %v814 = vxor.u32 %v813, 2147483648
  %v815 = vmul.f32 %v814, 1.442695
  %v816 = vpow.pop %v815
  %v817 = vadd.f32 %v816, 1.0
  %v818 = vrcp.pop %v817
  %v819 = vmul.f32 %v817, %v818
  %v820 = vsub.f32 1.0, %v819
  %v821 = vmul.f32 %v818, %v820
  %v822 = vadd.f32 %v818, %v821
  %vm823 = vweird.f32 %v817
  %vm824 = vweird.f32 %v818
  %vm825 = vmor %vm823, %vm824
  %v826 = vsel %vm825, %v818, %v822
  %v827 = vand.u32 2147483647, %v817
  %vm828 = vcmp.eq.f32.partialorder %v827, 8.507059e+37
  %v829 = vand.u32 %v817, 2147483648
  %v830 = vor.u32 1.1754944e-38, %v829
  %v831 = vsel %vm828, %v830, %v826
  %v832 = vmul.f32 1.0, %v831
  %v833 = vtanh.pop %v813
  %v834 = vmul.f32 %v832, %v710
  %836 = vrot.lane.b32.xlu0 %v833, 64
  %v837 = vpop.permute.xlu0 %836
  %v839 = vmul.f32 %v832, %v837
  %841 = vrot.lane.b32.xlu0 %v839, 32
  %v842 = vpop.permute.xlu0 %841
  %v844 = vadd.f32 %v834, %v842
  %v845 = vtanh.pop %v844
  %847 = vrot.lane.b32.xlu0 %v845, 64
  %v848 = vpop.permute.xlu0 %847
  %v850 = vmul.f32 %v832, %v848
  %852 = vrot.lane.b32.xlu0 %v850, 32
  %v853 = vpop.permute.xlu0 %852
  %s855 = scalar_lea.vmem [#allocation4], 24
  %856 = vst.msk [vmem:[%s855] sm:$0xff] %vm51, %v853
  %v857 = vld [vmem:[%s453] sm:$0xff]
  %v858 = vld [vmem:[%s451 + $0x8] sm:$0xff]
  %v859 = vsel %vm51, %v787, 0
  %861 = vmatpush.msra.mxu0 0.0
  %862 = vmatpush.msra.mxu0 0.0
  %863 = vmatpush.msra.mxu0 0.0
  %864 = vmatpush.msra.mxu0 0.0
  %865 = vmatpush.msra.mxu0 0.0
  %866 = vmatpush.msra.mxu0 0.0
  %867 = vmatpush.msra.mxu0 0.0
  %868 = vmatpush.msra.mxu0 0.0
  %869 = vmatpush.msra.mxu0 0.0
  %870 = vmatpush.msra.mxu0 0.0
  %871 = vmatpush.msra.mxu0 0.0
  %872 = vmatpush.msra.mxu0 0.0
  %873 = vmatpush.msra.mxu0 %v177
  %874 = vmatpush.msra.mxu0 %v176
  %875 = vmatpush.msra.mxu0 %v175
  %876 = vmatpush.msra.mxu0 %v174
  %877 = vmatmul.f32.gmra.mxu0 %v859
  %v878 = vpop.f32.mrf.mxu0
  %v879 = vadd.f32 0.0, %v878
  %880 = vdwg.mxu0
  %v881 = vadd.f32 %v857, %v879
  %v882 = vxor.u32 %v881, 2147483648
  %v883 = vmul.f32 %v882, 1.442695
  %v884 = vpow.pop %v883
  %v885 = vadd.f32 %v884, 1.0
  %v886 = vrcp.pop %v885
  %v887 = vmul.f32 %v885, %v886
  %v888 = vsub.f32 1.0, %v887
  %v889 = vmul.f32 %v886, %v888
  %v890 = vadd.f32 %v886, %v889
  %vm891 = vweird.f32 %v885
  %vm892 = vweird.f32 %v886
  %vm893 = vmor %vm891, %vm892
  %v894 = vsel %vm893, %v886, %v890
  %v895 = vand.u32 2147483647, %v885
  %vm896 = vcmp.eq.f32.partialorder %v895, 8.507059e+37
  %v897 = vand.u32 %v885, 2147483648
  %v898 = vor.u32 1.1754944e-38, %v897
  %v899 = vsel %vm896, %v898, %v894
  %v900 = vmul.f32 1.0, %v899
  %v901 = vtanh.pop %v881
  %v902 = vmul.f32 %v900, %v778
  %904 = vrot.lane.b32.xlu0 %v901, 64
  %v905 = vpop.permute.xlu0 %904
  %v907 = vmul.f32 %v900, %v905
  %909 = vrot.lane.b32.xlu0 %v907, 32
  %v910 = vpop.permute.xlu0 %909
  %v912 = vadd.f32 %v902, %v910
  %v913 = vtanh.pop %v912
  %915 = vrot.lane.b32.xlu0 %v913, 64
  %v916 = vpop.permute.xlu0 %915
  %v918 = vmul.f32 %v900, %v916
  %920 = vrot.lane.b32.xlu0 %v918, 32
  %v921 = vpop.permute.xlu0 %920
  %s923 = scalar_lea.vmem [#allocation3], 40
  %924 = vst.msk [vmem:[%s923] sm:$0xff] %vm51, %v921
  %v925 = vsel %vm51, %v853, 0
  %927 = vmatpush.msra.mxu0 0.0
  %928 = vmatpush.msra.mxu0 0.0
  %929 = vmatpush.msra.mxu0 0.0
  %930 = vmatpush.msra.mxu0 0.0
  %931 = vmatpush.msra.mxu0 0.0
  %932 = vmatpush.msra.mxu0 0.0
  %933 = vmatpush.msra.mxu0 0.0
  %934 = vmatpush.msra.mxu0 0.0
  %935 = vmatpush.msra.mxu0 0.0
  %936 = vmatpush.msra.mxu0 0.0
  %937 = vmatpush.msra.mxu0 0.0
  %938 = vmatpush.msra.mxu0 0.0
  %939 = vmatpush.msra.mxu0 %v181
  %940 = vmatpush.msra.mxu0 %v180
  %941 = vmatpush.msra.mxu0 %v179
  %942 = vmatpush.msra.mxu0 %v178
  %943 = vmatmul.f32.gmra.mxu0 %v925
  %v944 = vpop.f32.mrf.mxu0
  %v945 = vadd.f32 0.0, %v944
  %946 = vdwg.mxu0
  %v947 = vadd.f32 %v858, %v945
  %v948 = vxor.u32 %v947, 2147483648
  %v949 = vmul.f32 %v948, 1.442695
  %v950 = vpow.pop %v949
  %v951 = vadd.f32 %v950, 1.0
  %v952 = vrcp.pop %v951
  %v953 = vmul.f32 %v951, %v952
  %v954 = vsub.f32 1.0, %v953
  %v955 = vmul.f32 %v952, %v954
  %v956 = vadd.f32 %v952, %v955
  %vm957 = vweird.f32 %v951
  %vm958 = vweird.f32 %v952
  %vm959 = vmor %vm957, %vm958
  %v960 = vsel %vm959, %v952, %v956
  %v961 = vand.u32 2147483647, %v951
  %vm962 = vcmp.eq.f32.partialorder %v961, 8.507059e+37
  %v963 = vand.u32 %v951, 2147483648
  %v964 = vor.u32 1.1754944e-38, %v963
  %v965 = vsel %vm962, %v964, %v960
  %v966 = vmul.f32 1.0, %v965
  %v967 = vtanh.pop %v947
  %v968 = vmul.f32 %v966, %v844
  %970 = vrot.lane.b32.xlu0 %v967, 64
  %v971 = vpop.permute.xlu0 %970
  %v973 = vmul.f32 %v966, %v971
  %975 = vrot.lane.b32.xlu0 %v973, 32
  %v976 = vpop.permute.xlu0 %975
  %v978 = vadd.f32 %v968, %v976
  %v979 = vtanh.pop %v978
  %981 = vrot.lane.b32.xlu0 %v979, 64
  %v982 = vpop.permute.xlu0 %981
  %v984 = vmul.f32 %v966, %v982
  %986 = vrot.lane.b32.xlu0 %v984, 32
  %v987 = vpop.permute.xlu0 %986
  %s989 = scalar_lea.vmem [#allocation4], 16
  %990 = vst.msk [vmem:[%s989] sm:$0xff] %vm51, %v987
  %v991 = vld [vmem:[%s317] sm:$0xff]
  %v992 = vld [vmem:[%s315 + $0x8] sm:$0xff]
  %v993 = vsel %vm51, %v921, 0
  %995 = vmatpush.msra.mxu0 0.0
  %996 = vmatpush.msra.mxu0 0.0
  %997 = vmatpush.msra.mxu0 0.0
  %998 = vmatpush.msra.mxu0 0.0
  %999 = vmatpush.msra.mxu0 0.0
  %1000 = vmatpush.msra.mxu0 0.0
  %1001 = vmatpush.msra.mxu0 0.0
  %1002 = vmatpush.msra.mxu0 0.0
  %1003 = vmatpush.msra.mxu0 0.0
  %1004 = vmatpush.msra.mxu0 0.0
  %1005 = vmatpush.msra.mxu0 0.0
  %1006 = vmatpush.msra.mxu0 0.0
  %1007 = vmatpush.msra.mxu0 %v177
  %1008 = vmatpush.msra.mxu0 %v176
  %1009 = vmatpush.msra.mxu0 %v175
  %1010 = vmatpush.msra.mxu0 %v174
  %1011 = vmatmul.f32.gmra.mxu0 %v993
  %v1012 = vpop.f32.mrf.mxu0
  %v1013 = vadd.f32 0.0, %v1012
  %1014 = vdwg.mxu0
  %v1015 = vadd.f32 %v991, %v1013
  %v1016 = vxor.u32 %v1015, 2147483648
  %v1017 = vmul.f32 %v1016, 1.442695
  %v1018 = vpow.pop %v1017
  %v1019 = vadd.f32 %v1018, 1.0
  %v1020 = vrcp.pop %v1019
  %v1021 = vmul.f32 %v1019, %v1020
  %v1022 = vsub.f32 1.0, %v1021
  %v1023 = vmul.f32 %v1020, %v1022
  %v1024 = vadd.f32 %v1020, %v1023
  %vm1025 = vweird.f32 %v1019
  %vm1026 = vweird.f32 %v1020
  %vm1027 = vmor %vm1025, %vm1026
  %v1028 = vsel %vm1027, %v1020, %v1024
  %v1029 = vand.u32 2147483647, %v1019
  %vm1030 = vcmp.eq.f32.partialorder %v1029, 8.507059e+37
  %v1031 = vand.u32 %v1019, 2147483648
  %v1032 = vor.u32 1.1754944e-38, %v1031
  %v1033 = vsel %vm1030, %v1032, %v1028
  %v1034 = vmul.f32 1.0, %v1033
  %v1035 = vtanh.pop %v1015
  %v1036 = vmul.f32 %v1034, %v912
  %1038 = vrot.lane.b32.xlu0 %v1035, 64
  %v1039 = vpop.permute.xlu0 %1038
  %v1041 = vmul.f32 %v1034, %v1039
  %1043 = vrot.lane.b32.xlu0 %v1041, 32
  %v1044 = vpop.permute.xlu0 %1043
  %v1046 = vadd.f32 %v1036, %v1044
  %v1047 = vtanh.pop %v1046
  %1049 = vrot.lane.b32.xlu0 %v1047, 64
  %v1050 = vpop.permute.xlu0 %1049
  %v1052 = vmul.f32 %v1034, %v1050
  %1054 = vrot.lane.b32.xlu0 %v1052, 32
  %v1055 = vpop.permute.xlu0 %1054
  %s1057 = scalar_lea.vmem [#allocation3], 48
  %1058 = vst.msk [vmem:[%s1057] sm:$0xff] %vm51, %v1055
  %v1059 = vsel %vm51, %v987, 0
  %1061 = vmatpush.msra.mxu0 0.0
  %1062 = vmatpush.msra.mxu0 0.0
  %1063 = vmatpush.msra.mxu0 0.0
  %1064 = vmatpush.msra.mxu0 0.0
  %1065 = vmatpush.msra.mxu0 0.0
  %1066 = vmatpush.msra.mxu0 0.0
  %1067 = vmatpush.msra.mxu0 0.0
  %1068 = vmatpush.msra.mxu0 0.0
  %1069 = vmatpush.msra.mxu0 0.0
  %1070 = vmatpush.msra.mxu0 0.0
  %1071 = vmatpush.msra.mxu0 0.0
  %1072 = vmatpush.msra.mxu0 0.0
  %1073 = vmatpush.msra.mxu0 %v181
  %1074 = vmatpush.msra.mxu0 %v180
  %1075 = vmatpush.msra.mxu0 %v179
  %1076 = vmatpush.msra.mxu0 %v178
  %1077 = vmatmul.f32.gmra.mxu0 %v1059
  %v1078 = vpop.f32.mrf.mxu0
  %v1079 = vadd.f32 0.0, %v1078
  %1080 = vdwg.mxu0
  %v1081 = vadd.f32 %v992, %v1079
  %v1082 = vxor.u32 %v1081, 2147483648
  %v1083 = vmul.f32 %v1082, 1.442695
  %v1084 = vpow.pop %v1083
  %v1085 = vadd.f32 %v1084, 1.0
  %v1086 = vrcp.pop %v1085
  %v1087 = vmul.f32 %v1085, %v1086
  %v1088 = vsub.f32 1.0, %v1087
  %v1089 = vmul.f32 %v1086, %v1088
  %v1090 = vadd.f32 %v1086, %v1089
  %vm1091 = vweird.f32 %v1085
  %vm1092 = vweird.f32 %v1086
  %vm1093 = vmor %vm1091, %vm1092
  %v1094 = vsel %vm1093, %v1086, %v1090
  %v1095 = vand.u32 2147483647, %v1085
  %vm1096 = vcmp.eq.f32.partialorder %v1095, 8.507059e+37
  %v1097 = vand.u32 %v1085, 2147483648
  %v1098 = vor.u32 1.1754944e-38, %v1097
  %v1099 = vsel %vm1096, %v1098, %v1094
  %v1100 = vmul.f32 1.0, %v1099
  %v1101 = vtanh.pop %v1081
  %v1102 = vmul.f32 %v1100, %v978
  %1104 = vrot.lane.b32.xlu0 %v1101, 64
  %v1105 = vpop.permute.xlu0 %1104
  %v1107 = vmul.f32 %v1100, %v1105
  %1109 = vrot.lane.b32.xlu0 %v1107, 32
  %v1110 = vpop.permute.xlu0 %1109
  %v1112 = vadd.f32 %v1102, %v1110
  %v1113 = vtanh.pop %v1112
  %1115 = vrot.lane.b32.xlu0 %v1113, 64
  %v1116 = vpop.permute.xlu0 %1115
  %v1118 = vmul.f32 %v1100, %v1116
  %1120 = vrot.lane.b32.xlu0 %v1118, 32
  %v1121 = vpop.permute.xlu0 %1120
  %s1123 = scalar_lea.vmem [#allocation4], 8
  %1124 = vst.msk [vmem:[%s1123] sm:$0xff] %vm51, %v1121
  %v1125 = vld [vmem:[%s183] sm:$0xff]
  %v1126 = vld [vmem:[#allocation2 + $0x8] sm:$0xff]
  %v1127 = vsel %vm51, %v1055, 0
  %1129 = vmatpush.msra.mxu0 0.0
  %1130 = vmatpush.msra.mxu0 0.0
  %1131 = vmatpush.msra.mxu0 0.0
  %1132 = vmatpush.msra.mxu0 0.0
  %1133 = vmatpush.msra.mxu0 0.0
  %1134 = vmatpush.msra.mxu0 0.0
  %1135 = vmatpush.msra.mxu0 0.0
  %1136 = vmatpush.msra.mxu0 0.0
  %1137 = vmatpush.msra.mxu0 0.0
  %1138 = vmatpush.msra.mxu0 0.0
  %1139 = vmatpush.msra.mxu0 0.0
  %1140 = vmatpush.msra.mxu0 0.0
  %1141 = vmatpush.msra.mxu0 %v177
  %1142 = vmatpush.msra.mxu0 %v176
  %1143 = vmatpush.msra.mxu0 %v175
  %1144 = vmatpush.msra.mxu0 %v174
  %1145 = vmatmul.f32.gmra.mxu0 %v1127
  %v1146 = vpop.f32.mrf.mxu0
  %v1147 = vadd.f32 0.0, %v1146
  %1148 = vdwg.mxu0
  %v1149 = vadd.f32 %v1125, %v1147
  %v1150 = vxor.u32 %v1149, 2147483648
  %v1151 = vmul.f32 %v1150, 1.442695
  %v1152 = vpow.pop %v1151
  %v1153 = vadd.f32 %v1152, 1.0
  %v1154 = vrcp.pop %v1153
  %v1155 = vmul.f32 %v1153, %v1154
  %v1156 = vsub.f32 1.0, %v1155
  %v1157 = vmul.f32 %v1154, %v1156
  %v1158 = vadd.f32 %v1154, %v1157
  %vm1159 = vweird.f32 %v1153
  %vm1160 = vweird.f32 %v1154
  %vm1161 = vmor %vm1159, %vm1160
  %v1162 = vsel %vm1161, %v1154, %v1158
  %v1163 = vand.u32 2147483647, %v1153
  %vm1164 = vcmp.eq.f32.partialorder %v1163, 8.507059e+37
  %v1165 = vand.u32 %v1153, 2147483648
  %v1166 = vor.u32 1.1754944e-38, %v1165
  %v1167 = vsel %vm1164, %v1166, %v1162
  %v1168 = vmul.f32 1.0, %v1167
  %v1169 = vtanh.pop %v1149
  %v1170 = vmul.f32 %v1168, %v1046
  %1172 = vrot.lane.b32.xlu0 %v1169, 64
  %v1173 = vpop.permute.xlu0 %1172
  %v1175 = vmul.f32 %v1168, %v1173
  %1177 = vrot.lane.b32.xlu0 %v1175, 32
  %v1178 = vpop.permute.xlu0 %1177
  %v1180 = vadd.f32 %v1170, %v1178
  %v1181 = vtanh.pop %v1180
  %1183 = vrot.lane.b32.xlu0 %v1181, 64
  %v1184 = vpop.permute.xlu0 %1183
  %v1186 = vmul.f32 %v1168, %v1184
  %1188 = vrot.lane.b32.xlu0 %v1186, 32
  %v1189 = vpop.permute.xlu0 %1188
  %s1191 = scalar_lea.vmem [#allocation3], 56
  %1192 = vst.msk [vmem:[%s1191] sm:$0xff] %vm51, %v1189
  %v1193 = vsel %vm51, %v1121, 0
  %1195 = vmatpush.msra.mxu0 0.0
  %1196 = vmatpush.msra.mxu0 0.0
  %1197 = vmatpush.msra.mxu0 0.0
  %1198 = vmatpush.msra.mxu0 0.0
  %1199 = vmatpush.msra.mxu0 0.0
  %1200 = vmatpush.msra.mxu0 0.0
  %1201 = vmatpush.msra.mxu0 0.0
  %1202 = vmatpush.msra.mxu0 0.0
  %1203 = vmatpush.msra.mxu0 0.0
  %1204 = vmatpush.msra.mxu0 0.0
  %1205 = vmatpush.msra.mxu0 0.0
  %1206 = vmatpush.msra.mxu0 0.0
  %1207 = vmatpush.msra.mxu0 %v181
  %1208 = vmatpush.msra.mxu0 %v180
  %1209 = vmatpush.msra.mxu0 %v179
  %1210 = vmatpush.msra.mxu0 %v178
  %1211 = vmatmul.f32.gmra.mxu0 %v1193
  %v1212 = vpop.f32.mrf.mxu0
  %v1213 = vadd.f32 0.0, %v1212
  %1214 = vdwg.mxu0
  %v1215 = vadd.f32 %v1126, %v1213
  %v1216 = vxor.u32 %v1215, 2147483648
  %v1217 = vmul.f32 %v1216, 1.442695
  %v1218 = vpow.pop %v1217
  %v1219 = vadd.f32 %v1218, 1.0
  %v1220 = vrcp.pop %v1219
  %v1221 = vmul.f32 %v1219, %v1220
  %v1222 = vsub.f32 1.0, %v1221
  %v1223 = vmul.f32 %v1220, %v1222
  %v1224 = vadd.f32 %v1220, %v1223
  %vm1225 = vweird.f32 %v1219
  %vm1226 = vweird.f32 %v1220
  %vm1227 = vmor %vm1225, %vm1226
  %v1228 = vsel %vm1227, %v1220, %v1224
  %v1229 = vand.u32 2147483647, %v1219
  %vm1230 = vcmp.eq.f32.partialorder %v1229, 8.507059e+37
  %v1231 = vand.u32 %v1219, 2147483648
  %v1232 = vor.u32 1.1754944e-38, %v1231
  %v1233 = vsel %vm1230, %v1232, %v1228
  %v1234 = vmul.f32 1.0, %v1233
  %v1235 = vtanh.pop %v1215
  %v1236 = vmul.f32 %v1234, %v1112
  %1238 = vrot.lane.b32.xlu0 %v1235, 64
  %v1239 = vpop.permute.xlu0 %1238
  %v1241 = vmul.f32 %v1234, %v1239
  %1243 = vrot.lane.b32.xlu0 %v1241, 32
  %v1244 = vpop.permute.xlu0 %1243
  %v1246 = vadd.f32 %v1236, %v1244
  %v1247 = vtanh.pop %v1246
  %1249 = vrot.lane.b32.xlu0 %v1247, 64
  %v1250 = vpop.permute.xlu0 %1249
  %v1252 = vmul.f32 %v1234, %v1250
  %1254 = vrot.lane.b32.xlu0 %v1252, 32
  %v1255 = vpop.permute.xlu0 %1254
  %1257 = vst.msk [vmem:[#allocation4] sm:$0xff] %vm51, %v1255
  %v1258 = vld [vmem:[#allocation3] sm:$0xff]
  %v1259 = vld [vmem:[#allocation3 + $0x8] sm:$0xff]
  %v1260 = vld [vmem:[#allocation3 + $0x10] sm:$0xff]
  %v1261 = vld [vmem:[#allocation3 + $0x18] sm:$0xff]
  %v1262 = vld [vmem:[#allocation3 + $0x20] sm:$0xff]
  %v1263 = vld [vmem:[#allocation3 + $0x28] sm:$0xff]
  %v1264 = vld [vmem:[#allocation3 + $0x30] sm:$0xff]
  %v1265 = vld [vmem:[#allocation3 + $0x38] sm:$0xff]
  %v1266 = vld [vmem:[#allocation4] sm:$0xff]
  %v1267 = vld [vmem:[#allocation4 + $0x8] sm:$0xff]
  %v1268 = vld [vmem:[#allocation4 + $0x10] sm:$0xff]
  %v1269 = vld [vmem:[#allocation4 + $0x18] sm:$0xff]
  %v1270 = vld [vmem:[#allocation4 + $0x20] sm:$0xff]
  %v1271 = vld [vmem:[#allocation4 + $0x28] sm:$0xff]
  %v1272 = vld [vmem:[#allocation4 + $0x30] sm:$0xff]
  %v1273 = vld [vmem:[#allocation4 + $0x38] sm:$0xff]
  %v1274 = vld [vmem:[%s5] sm:$0xff]
  %v1275 = vld [vmem:[%s5 + $0x8] sm:$0xff]
  %v1276 = vld [vmem:[%s5 + $0x10] sm:$0xff]
  %v1277 = vld [vmem:[%s5 + $0x18] sm:$0xff]
  %v1278 = vld [vmem:[%s6] sm:$0xff]
  %v1279 = vld [vmem:[%s6 + $0x8] sm:$0xff]
  %v1280 = vld [vmem:[%s6 + $0x10] sm:$0xff]
  %v1281 = vld [vmem:[%s6 + $0x18] sm:$0xff]
  %v1283 = vsel %vm51, %v1266, 0
  %v1286 = vsel %vm51, %v1267, 0
  %v1289 = vsel %vm51, %v1268, 0
  %v1292 = vsel %vm51, %v1269, 0
  %v1295 = vsel %vm51, %v1270, 0
  %v1298 = vsel %vm51, %v1271, 0
  %v1301 = vsel %vm51, %v1272, 0
  %v1304 = vsel %vm51, %v1273, 0
  %1306 = vmatpush.msra.mxu0 0.0
  %1307 = vmatpush.msra.mxu0 0.0
  %1308 = vmatpush.msra.mxu0 0.0
  %1309 = vmatpush.msra.mxu0 0.0
  %1310 = vmatpush.msra.mxu0 0.0
  %1311 = vmatpush.msra.mxu0 0.0
  %1312 = vmatpush.msra.mxu0 0.0
  %1313 = vmatpush.msra.mxu0 0.0
  %1314 = vmatpush.msra.mxu0 0.0
  %1315 = vmatpush.msra.mxu0 0.0
  %1316 = vmatpush.msra.mxu0 0.0
  %1317 = vmatpush.msra.mxu0 0.0
  %1318 = vmatpush.msra.mxu0 %v1281
  %1319 = vmatpush.msra.mxu0 %v1280
  %1320 = vmatpush.msra.mxu0 %v1279
  %1321 = vmatpush.msra.mxu0 %v1278
  %1322 = vmatmul.f32.gmra.mxu0 %v1283
  %v1323 = vpop.f32.mrf.mxu0
  %v1324 = vadd.f32 0.0, %v1323
  %1325 = vmatmul.f32.gmra.mxu0 %v1286
  %v1326 = vpop.f32.mrf.mxu0
  %v1327 = vadd.f32 0.0, %v1326
  %1328 = vmatmul.f32.gmra.mxu0 %v1289
  %v1329 = vpop.f32.mrf.mxu0
  %v1330 = vadd.f32 0.0, %v1329
  %1331 = vmatmul.f32.gmra.mxu0 %v1292
  %v1332 = vpop.f32.mrf.mxu0
  %v1333 = vadd.f32 0.0, %v1332
  %1334 = vmatmul.f32.gmra.mxu0 %v1295
  %v1335 = vpop.f32.mrf.mxu0
  %v1336 = vadd.f32 0.0, %v1335
  %1337 = vmatmul.f32.gmra.mxu0 %v1298
  %v1338 = vpop.f32.mrf.mxu0
  %v1339 = vadd.f32 0.0, %v1338
  %1340 = vmatmul.f32.gmra.mxu0 %v1301
  %v1341 = vpop.f32.mrf.mxu0
  %v1342 = vadd.f32 0.0, %v1341
  %1343 = vmatmul.f32.gmra.mxu0 %v1304
  %v1344 = vpop.f32.mrf.mxu0
  %v1345 = vadd.f32 0.0, %v1344
  %1346 = vdwg.mxu0
  %v1348 = vsel %vm51, %v1258, 0
  %v1351 = vsel %vm51, %v1259, 0
  %v1354 = vsel %vm51, %v1260, 0
  %v1357 = vsel %vm51, %v1261, 0
  %v1360 = vsel %vm51, %v1262, 0
  %v1363 = vsel %vm51, %v1263, 0
  %v1366 = vsel %vm51, %v1264, 0
  %v1369 = vsel %vm51, %v1265, 0
  %1371 = vmatpush.msra.mxu0 0.0
  %1372 = vmatpush.msra.mxu0 0.0
  %1373 = vmatpush.msra.mxu0 0.0
  %1374 = vmatpush.msra.mxu0 0.0
  %1375 = vmatpush.msra.mxu0 0.0
  %1376 = vmatpush.msra.mxu0 0.0
  %1377 = vmatpush.msra.mxu0 0.0
  %1378 = vmatpush.msra.mxu0 0.0
  %1379 = vmatpush.msra.mxu0 0.0
  %1380 = vmatpush.msra.mxu0 0.0
  %1381 = vmatpush.msra.mxu0 0.0
  %1382 = vmatpush.msra.mxu0 0.0
  %1383 = vmatpush.msra.mxu0 %v1277
  %1384 = vmatpush.msra.mxu0 %v1276
  %1385 = vmatpush.msra.mxu0 %v1275
  %1386 = vmatpush.msra.mxu0 %v1274
  %1387 = vmatmul.f32.gmra.mxu0 %v1348
  %v1388 = vpop.f32.mrf.mxu0
  %v1389 = vadd.f32 %v1324, %v1388
  %1390 = vmatmul.f32.gmra.mxu0 %v1351
  %v1391 = vpop.f32.mrf.mxu0
  %v1392 = vadd.f32 %v1327, %v1391
  %1393 = vmatmul.f32.gmra.mxu0 %v1354
  %v1394 = vpop.f32.mrf.mxu0
  %v1395 = vadd.f32 %v1330, %v1394
  %1396 = vmatmul.f32.gmra.mxu0 %v1357
  %v1397 = vpop.f32.mrf.mxu0
  %v1398 = vadd.f32 %v1333, %v1397
  %1399 = vmatmul.f32.gmra.mxu0 %v1360
  %v1400 = vpop.f32.mrf.mxu0
  %v1401 = vadd.f32 %v1336, %v1400
  %1402 = vmatmul.f32.gmra.mxu0 %v1363
  %v1403 = vpop.f32.mrf.mxu0
  %v1404 = vadd.f32 %v1339, %v1403
  %1405 = vmatmul.f32.gmra.mxu0 %v1366
  %v1406 = vpop.f32.mrf.mxu0
  %v1407 = vadd.f32 %v1342, %v1406
  %1408 = vmatmul.f32.gmra.mxu0 %v1369
  %v1409 = vpop.f32.mrf.mxu0
  %v1410 = vadd.f32 %v1345, %v1409
  %1411 = vdwg.mxu0
  %v1412 = vld [vmem:[%s7] sm:$0x1]
  %v1414 = vperm.slane %v1412, 0
  %v1416 = vadd.f32 %v1389, %v1414
  %v1417 = vadd.f32 %v1392, %v1414
  %v1418 = vadd.f32 %v1395, %v1414
  %v1419 = vadd.f32 %v1398, %v1414
  %v1420 = vadd.f32 %v1401, %v1414
  %v1421 = vadd.f32 %v1404, %v1414
  %v1422 = vadd.f32 %v1407, %v1414
  %v1423 = vadd.f32 %v1410, %v1414
  %1424 = vst [vmem:[%s8] sm:$0xff] %v1416
  %1425 = vst [vmem:[%s8 + $0x8] sm:$0xff] %v1417
  %1426 = vst [vmem:[%s8 + $0x10] sm:$0xff] %v1418
  %1427 = vst [vmem:[%s8 + $0x18] sm:$0xff] %v1419
  %1428 = vst [vmem:[%s8 + $0x20] sm:$0xff] %v1420
  %1429 = vst [vmem:[%s8 + $0x28] sm:$0xff] %v1421
  %1430 = vst [vmem:[%s8 + $0x30] sm:$0xff] %v1422
  %1431 = vst [vmem:[%s8 + $0x38] sm:$0xff] %v1423
  // Predicated region
  $region34: #{ner_forward.1} parent=0 // pred_check
    _
  $region35: #{ner_forward.1} parent=0 // pred_check_branch
    %1433 = sbr.rel (0) target = $region37
  $region36: #{ner_forward.1} parent=0 // pred_region
    _
  $region37: #{ner_forward.1} parent=0 // pred_fallthru
    _
  // Predicated region
  $region38: #{ner_forward.1} parent=0 // pred_check
    _
  $region39: #{ner_forward.1} parent=0 // pred_check_branch
    %1435 = sbr.rel (0) target = $region41
  $region40: #{ner_forward.1} parent=0 // pred_region
    _
  $region41: #{ner_forward.1} parent=0 // pred_fallthru
    _

</llo_original>
